<compile_context>
chip_gen: v6e
topology: v6e:2x2x1
jax: 0.10.0
libtpu: 0.0.40
codegen_flags: <defaults>
</compile_context>

<pallas_src>
import jax
import jax.numpy as jnp
from jax.experimental import pallas as pl
from jax.experimental.pallas import tpu as pltpu


# -----------------------------------------------------------------------------
# Pallas kernel: wavefront stacked-RNN recurrence + split FC head + sigmoid.
# All operands are tiny, so everything lives as whole-array VMEM blocks (no grid).
# -----------------------------------------------------------------------------
def make_stock_rnn_kernel(num_layers: int, seq_len: int, batch_pad: int):
    def kernel(*refs):
        x_ref, sent_ref = refs[0], refs[1]                       # x_ref: (T*Bp, I) time-major
        layer_refs = refs[2 : 2 + 3 * num_layers]                # (w_ih, w_hh, b) per layer
        wfc_h_ref = refs[2 + 3 * num_layers]                     # (H, OUT_PAD)
        wfc_s_ref = refs[3 + 3 * num_layers]                     # (S, OUT_PAD)
        bfc_ref = refs[4 + 3 * num_layers]                       # (1, OUT_PAD)
        out_ref = refs[-1]                                       # (Bp, OUT_PAD)

        Bp = batch_pad
        H = layer_refs[1].shape[0]                               # w_hh is (H, H)

        # Hoisted weight / bias loads: read each ref exactly once.
        w_ih = [layer_refs[3 * l][...] for l in range(num_layers)]
        w_hh = [layer_refs[3 * l + 1][...] for l in range(num_layers)]
        b = [layer_refs[3 * l + 2][...] for l in range(num_layers)]

        # Layer-0 input projection for ALL timesteps: one batched MXU pass + one bias bcast.
        proj0 = (
            jnp.dot(x_ref[...], w_ih[0], preferred_element_type=jnp.float32) + b[0]
        )  # (T*Bp, H)

        # Wavefront recurrence: time-outer / layer-inner. Only h @ W_hh sits on each layer's
        # serial chain; the h_{l-1} @ W_ih_l projection for deeper layers is off-chain and
        # overlaps with the previous layer's next step under the LLO scheduler.
        h = [jnp.zeros((Bp, H), jnp.float32) for _ in range(num_layers)]
        for t in range(seq_len):
            p_t = proj0[t * Bp : (t + 1) * Bp, :]                # tile-aligned static slice
            h[0] = jnp.tanh(
                p_t + jnp.dot(h[0], w_hh[0], preferred_element_type=jnp.float32)
            )
            for l in range(1, num_layers):
                h[l] = jnp.tanh(
                    jnp.dot(h[l - 1], w_ih[l], preferred_element_type=jnp.float32)
                    + b[l]
                    + jnp.dot(h[l], w_hh[l], preferred_element_type=jnp.float32)
                )

        # FC head: fc(cat([hn[-1], sentiment], 1)) without the lane concat — two independent
        # small matmuls summed. Output block is lane-dense (padded to 128 lanes).
        logits = (
            jnp.dot(h[-1], wfc_h_ref[...], preferred_element_type=jnp.float32)
            + jnp.dot(sent_ref[...], wfc_s_ref[...], preferred_element_type=jnp.float32)
            + bfc_ref[...]
        )
        out_ref[...] = jax.nn.sigmoid(logits)

    return kernel


# -----------------------------------------------------------------------------
# Wrapper: layout prep (time-major + sublane-padded x, lane-padded head) + pallas_call.
# -----------------------------------------------------------------------------
def stock_rnn_forward(x, sentiment, params, num_layers):
    B, T, I = x.shape
    sentiment = sentiment.reshape(B, -1)                         # sentiment_data.view(B, -1)
    S = sentiment.shape[1]
    output_size = params["b_fc"].shape[-1]

    B_PAD = max(8, ((B + 7) // 8) * 8)                           # sublane-aligned batch
    OUT_PAD = ((output_size + 127) // 128) * 128                 # lane-dense output store

    # Single re-layout pass: (B, T, I) -> (T, B, I) -> zero-pad batch to B_PAD -> (T*B_PAD, I).
    # Every per-step slab in the kernel then starts at a multiple-of-8 sublane offset.
    x_tm = jnp.transpose(x, (1, 0, 2))
    x_tm = jnp.pad(x_tm, ((0, 0), (0, B_PAD - B), (0, 0)))
    x_tm = x_tm.reshape(T * B_PAD, I)

    sent_p = jnp.pad(sentiment, ((0, B_PAD - B), (0, 0)))        # (B_PAD, S)

    # Split + lane-pad the FC head (zero columns -> sigmoid(0)=0.5, sliced off below).
    wfc_h = jnp.pad(params["w_fc_h"], ((0, 0), (0, OUT_PAD - output_size)))
    wfc_s = jnp.pad(params["w_fc_s"], ((0, 0), (0, OUT_PAD - output_size)))
    bfc = jnp.pad(params["b_fc"], ((0, 0), (0, OUT_PAD - output_size)))

    args = [x_tm, sent_p]
    for l in range(num_layers):
        args += [params[f"w_ih_{l}"], params[f"w_hh_{l}"], params[f"b_{l}"]]
    args += [wfc_h, wfc_s, bfc]

    vmem_spec = pl.BlockSpec(memory_space=pltpu.MemorySpace.VMEM)

    out_pad = pl.pallas_call(
        make_stock_rnn_kernel(num_layers, T, B_PAD),
        out_shape=jax.ShapeDtypeStruct((B_PAD, OUT_PAD), jnp.float32),
        in_specs=[vmem_spec] * len(args),
        out_specs=vmem_spec,
    )(*args)

    return out_pad[:B, :output_size]


def make_params(key, input_size, hidden_size, output_size, sentiment_size, num_layers):
    """Deterministic init mimicking PyTorch defaults (U(-1/sqrt(fan), 1/sqrt(fan)))."""
    params = {}
    k_rnn = 1.0 / jnp.sqrt(hidden_size)
    for l in range(num_layers):
        in_feat = input_size if l == 0 else hidden_size
        key, k1, k2, k3, k4 = jax.random.split(key, 5)
        # PyTorch stores W_ih as (H, in); pre-transpose to (in, H) for row-major matmuls.
        params[f"w_ih_{l}"] = jax.random.uniform(k1, (in_feat, hidden_size), jnp.float32, -k_rnn, k_rnn)
        params[f"w_hh_{l}"] = jax.random.uniform(k2, (hidden_size, hidden_size), jnp.float32, -k_rnn, k_rnn)
        b_ih = jax.random.uniform(k3, (1, hidden_size), jnp.float32, -k_rnn, k_rnn)
        b_hh = jax.random.uniform(k4, (1, hidden_size), jnp.float32, -k_rnn, k_rnn)
        params[f"b_{l}"] = b_ih + b_hh                           # combined bias (identical math)

    fan_in = hidden_size + sentiment_size
    k_fc = 1.0 / jnp.sqrt(fan_in)
    key, k1, k2 = jax.random.split(key, 3)
    w_fc = jax.random.uniform(k1, (output_size, fan_in), jnp.float32, -k_fc, k_fc)  # PyTorch (out, H+S)
    params["w_fc_h"] = w_fc[:, :hidden_size].T                   # (H, out)
    params["w_fc_s"] = w_fc[:, hidden_size:].T                   # (S, out)
    params["b_fc"] = jax.random.uniform(k2, (1, output_size), jnp.float32, -k_fc, k_fc)
    return params


def stock_rnn_reference(x, sentiment, params, num_layers):
    """Pure-JAX reference of the PyTorch forward (silent correctness check)."""
    B, T, _ = x.shape
    H = params["w_hh_0"].shape[0]
    hp = jax.lax.Precision.HIGHEST
    hs = [jnp.zeros((B, H), jnp.float32) for _ in range(num_layers)]
    for t in range(T):
        inp = x[:, t, :]
        for l in range(num_layers):
            hs[l] = jnp.tanh(
                jnp.dot(inp, params[f"w_ih_{l}"], precision=hp)
                + jnp.dot(hs[l], params[f"w_hh_{l}"], precision=hp)
                + params[f"b_{l}"]
            )
            inp = hs[l]
    sentiment = sentiment.reshape(B, -1)
    logits = (
        jnp.dot(hs[-1], params["w_fc_h"], precision=hp)
        + jnp.dot(sentiment, params["w_fc_s"], precision=hp)
        + params["b_fc"]
    )
    return jax.nn.sigmoid(logits)


if __name__ == "__main__":
    # Small shapes consistent with the module's forward.
    batch, seq = 2, 8
    input_size, hidden_size, output_size, sentiment_size, num_layers = 4, 32, 1, 4, 2

    key = jax.random.PRNGKey(0)
    key, kx, ks, kp = jax.random.split(key, 4)
    x = jax.random.normal(kx, (batch, seq, input_size), jnp.float32)
    sentiment = jax.random.normal(ks, (batch, sentiment_size), jnp.float32)
    params = make_params(kp, input_size, hidden_size, output_size, sentiment_size, num_layers)

    out = stock_rnn_forward(x, sentiment, params, num_layers)
    out = jax.block_until_ready(out)

    ref = stock_rnn_reference(x, sentiment, params, num_layers)
    assert out.shape == (batch, output_size)
    assert jnp.allclose(out, ref, atol=1e-4, rtol=1e-4), "Pallas kernel mismatch vs JAX reference"

    print("KERNEL_OK")
</pallas_src>

<mosaic_0001>
module attributes {stable_mosaic.version = 11 : i64} {
  func.func @kernel(%arg0: memref<64x4xf32, #tpu.memory_space<vmem>>, %arg1: memref<8x4xf32, #tpu.memory_space<vmem>>, %arg2: memref<4x32xf32, #tpu.memory_space<vmem>>, %arg3: memref<32x32xf32, #tpu.memory_space<vmem>>, %arg4: memref<1x32xf32, #tpu.memory_space<vmem>>, %arg5: memref<32x32xf32, #tpu.memory_space<vmem>>, %arg6: memref<32x32xf32, #tpu.memory_space<vmem>>, %arg7: memref<1x32xf32, #tpu.memory_space<vmem>>, %arg8: memref<32x128xf32, #tpu.memory_space<vmem>>, %arg9: memref<4x128xf32, #tpu.memory_space<vmem>>, %arg10: memref<1x128xf32, #tpu.memory_space<vmem>>, %arg11: memref<8x128xf32, #tpu.memory_space<vmem>>) attributes {dimension_semantics = [], scalar_prefetch = 0 : i64, scratch_operands = 0 : i64, tpu.core_type = #tpu.core_type<tc>} {
    %c0 = arith.constant 0 : index
    %c0_0 = arith.constant 0 : index
    %0 = vector.load %arg2[%c0, %c0_0] : memref<4x32xf32, #tpu.memory_space<vmem>>, vector<4x32xf32>
    %c0_1 = arith.constant 0 : index
    %c0_2 = arith.constant 0 : index
    %1 = vector.load %arg5[%c0_1, %c0_2] : memref<32x32xf32, #tpu.memory_space<vmem>>, vector<32x32xf32>
    %c0_3 = arith.constant 0 : index
    %c0_4 = arith.constant 0 : index
    %2 = vector.load %arg3[%c0_3, %c0_4] : memref<32x32xf32, #tpu.memory_space<vmem>>, vector<32x32xf32>
    %c0_5 = arith.constant 0 : index
    %c0_6 = arith.constant 0 : index
    %3 = vector.load %arg6[%c0_5, %c0_6] : memref<32x32xf32, #tpu.memory_space<vmem>>, vector<32x32xf32>
    %c0_7 = arith.constant 0 : index
    %c0_8 = arith.constant 0 : index
    %4 = vector.load %arg4[%c0_7, %c0_8] : memref<1x32xf32, #tpu.memory_space<vmem>>, vector<1x32xf32>
    %c0_9 = arith.constant 0 : index
    %c0_10 = arith.constant 0 : index
    %5 = vector.load %arg7[%c0_9, %c0_10] : memref<1x32xf32, #tpu.memory_space<vmem>>, vector<1x32xf32>
    %c0_11 = arith.constant 0 : index
    %c0_12 = arith.constant 0 : index
    %6 = vector.load %arg0[%c0_11, %c0_12] : memref<64x4xf32, #tpu.memory_space<vmem>>, vector<64x4xf32>
    %cst = arith.constant dense<0.000000e+00> : vector<64x32xf32>
    %7 = tpu.matmul %6, %0, %cst {dimension_numbers = #tpu.dot_dimension_numbers<[1], [0], [0], [1], [0, 0, 1, 1], [], []>} : vector<64x4xf32>, vector<4x32xf32>, vector<64x32xf32> -> vector<64x32xf32>
    %8 = vector.broadcast %4 : vector<1x32xf32> to vector<64x32xf32>
    %9 = arith.addf %7, %8 : vector<64x32xf32>
    %cst_13 = arith.constant 0.000000e+00 : f32
    %10 = vector.broadcast %cst_13 : f32 to vector<8x32xf32>
    %cst_14 = arith.constant 0.000000e+00 : f32
    %11 = vector.broadcast %cst_14 : f32 to vector<8x32xf32>
    %12 = vector.extract_strided_slice %9 {offsets = [0, 0], sizes = [8, 32], strides = [1, 1]} : vector<64x32xf32> to vector<8x32xf32>
    %cst_15 = arith.constant dense<0.000000e+00> : vector<8x32xf32>
    %13 = tpu.matmul %10, %2, %cst_15 {dimension_numbers = #tpu.dot_dimension_numbers<[1], [0], [0], [1], [0, 0, 1, 1], [], []>} : vector<8x32xf32>, vector<32x32xf32>, vector<8x32xf32> -> vector<8x32xf32>
    %14 = arith.addf %12, %13 : vector<8x32xf32>
    %15 = math.tanh %14 : vector<8x32xf32>
    %cst_16 = arith.constant dense<0.000000e+00> : vector<8x32xf32>
    %16 = tpu.matmul %15, %1, %cst_16 {dimension_numbers = #tpu.dot_dimension_numbers<[1], [0], [0], [1], [0, 0, 1, 1], [], []>} : vector<8x32xf32>, vector<32x32xf32>, vector<8x32xf32> -> vector<8x32xf32>
    %17 = vector.broadcast %5 : vector<1x32xf32> to vector<8x32xf32>
    %18 = arith.addf %16, %17 : vector<8x32xf32>
    %cst_17 = arith.constant dense<0.000000e+00> : vector<8x32xf32>
    %19 = tpu.matmul %11, %3, %cst_17 {dimension_numbers = #tpu.dot_dimension_numbers<[1], [0], [0], [1], [0, 0, 1, 1], [], []>} : vector<8x32xf32>, vector<32x32xf32>, vector<8x32xf32> -> vector<8x32xf32>
    %20 = arith.addf %18, %19 : vector<8x32xf32>
    %21 = math.tanh %20 : vector<8x32xf32>
    %22 = vector.extract_strided_slice %9 {offsets = [8, 0], sizes = [8, 32], strides = [1, 1]} : vector<64x32xf32> to vector<8x32xf32>
    %cst_18 = arith.constant dense<0.000000e+00> : vector<8x32xf32>
    %23 = tpu.matmul %15, %2, %cst_18 {dimension_numbers = #tpu.dot_dimension_numbers<[1], [0], [0], [1], [0, 0, 1, 1], [], []>} : vector<8x32xf32>, vector<32x32xf32>, vector<8x32xf32> -> vector<8x32xf32>
    %24 = arith.addf %22, %23 : vector<8x32xf32>
    %25 = math.tanh %24 : vector<8x32xf32>
    %cst_19 = arith.constant dense<0.000000e+00> : vector<8x32xf32>
    %26 = tpu.matmul %25, %1, %cst_19 {dimension_numbers = #tpu.dot_dimension_numbers<[1], [0], [0], [1], [0, 0, 1, 1], [], []>} : vector<8x32xf32>, vector<32x32xf32>, vector<8x32xf32> -> vector<8x32xf32>
    %27 = vector.broadcast %5 : vector<1x32xf32> to vector<8x32xf32>
    %28 = arith.addf %26, %27 : vector<8x32xf32>
    %cst_20 = arith.constant dense<0.000000e+00> : vector<8x32xf32>
    %29 = tpu.matmul %21, %3, %cst_20 {dimension_numbers = #tpu.dot_dimension_numbers<[1], [0], [0], [1], [0, 0, 1, 1], [], []>} : vector<8x32xf32>, vector<32x32xf32>, vector<8x32xf32> -> vector<8x32xf32>
    %30 = arith.addf %28, %29 : vector<8x32xf32>
    %31 = math.tanh %30 : vector<8x32xf32>
    %32 = vector.extract_strided_slice %9 {offsets = [16, 0], sizes = [8, 32], strides = [1, 1]} : vector<64x32xf32> to vector<8x32xf32>
    %cst_21 = arith.constant dense<0.000000e+00> : vector<8x32xf32>
    %33 = tpu.matmul %25, %2, %cst_21 {dimension_numbers = #tpu.dot_dimension_numbers<[1], [0], [0], [1], [0, 0, 1, 1], [], []>} : vector<8x32xf32>, vector<32x32xf32>, vector<8x32xf32> -> vector<8x32xf32>
    %34 = arith.addf %32, %33 : vector<8x32xf32>
    %35 = math.tanh %34 : vector<8x32xf32>
    %cst_22 = arith.constant dense<0.000000e+00> : vector<8x32xf32>
    %36 = tpu.matmul %35, %1, %cst_22 {dimension_numbers = #tpu.dot_dimension_numbers<[1], [0], [0], [1], [0, 0, 1, 1], [], []>} : vector<8x32xf32>, vector<32x32xf32>, vector<8x32xf32> -> vector<8x32xf32>
    %37 = vector.broadcast %5 : vector<1x32xf32> to vector<8x32xf32>
    %38 = arith.addf %36, %37 : vector<8x32xf32>
    %cst_23 = arith.constant dense<0.000000e+00> : vector<8x32xf32>
    %39 = tpu.matmul %31, %3, %cst_23 {dimension_numbers = #tpu.dot_dimension_numbers<[1], [0], [0], [1], [0, 0, 1, 1], [], []>} : vector<8x32xf32>, vector<32x32xf32>, vector<8x32xf32> -> vector<8x32xf32>
    %40 = arith.addf %38, %39 : vector<8x32xf32>
    %41 = math.tanh %40 : vector<8x32xf32>
    %42 = vector.extract_strided_slice %9 {offsets = [24, 0], sizes = [8, 32], strides = [1, 1]} : vector<64x32xf32> to vector<8x32xf32>
    %cst_24 = arith.constant dense<0.000000e+00> : vector<8x32xf32>
    %43 = tpu.matmul %35, %2, %cst_24 {dimension_numbers = #tpu.dot_dimension_numbers<[1], [0], [0], [1], [0, 0, 1, 1], [], []>} : vector<8x32xf32>, vector<32x32xf32>, vector<8x32xf32> -> vector<8x32xf32>
    %44 = arith.addf %42, %43 : vector<8x32xf32>
    %45 = math.tanh %44 : vector<8x32xf32>
    %cst_25 = arith.constant dense<0.000000e+00> : vector<8x32xf32>
    %46 = tpu.matmul %45, %1, %cst_25 {dimension_numbers = #tpu.dot_dimension_numbers<[1], [0], [0], [1], [0, 0, 1, 1], [], []>} : vector<8x32xf32>, vector<32x32xf32>, vector<8x32xf32> -> vector<8x32xf32>
    %47 = vector.broadcast %5 : vector<1x32xf32> to vector<8x32xf32>
    %48 = arith.addf %46, %47 : vector<8x32xf32>
    %cst_26 = arith.constant dense<0.000000e+00> : vector<8x32xf32>
    %49 = tpu.matmul %41, %3, %cst_26 {dimension_numbers = #tpu.dot_dimension_numbers<[1], [0], [0], [1], [0, 0, 1, 1], [], []>} : vector<8x32xf32>, vector<32x32xf32>, vector<8x32xf32> -> vector<8x32xf32>
    %50 = arith.addf %48, %49 : vector<8x32xf32>
    %51 = math.tanh %50 : vector<8x32xf32>
    %52 = vector.extract_strided_slice %9 {offsets = [32, 0], sizes = [8, 32], strides = [1, 1]} : vector<64x32xf32> to vector<8x32xf32>
    %cst_27 = arith.constant dense<0.000000e+00> : vector<8x32xf32>
    %53 = tpu.matmul %45, %2, %cst_27 {dimension_numbers = #tpu.dot_dimension_numbers<[1], [0], [0], [1], [0, 0, 1, 1], [], []>} : vector<8x32xf32>, vector<32x32xf32>, vector<8x32xf32> -> vector<8x32xf32>
    %54 = arith.addf %52, %53 : vector<8x32xf32>
    %55 = math.tanh %54 : vector<8x32xf32>
    %cst_28 = arith.constant dense<0.000000e+00> : vector<8x32xf32>
    %56 = tpu.matmul %55, %1, %cst_28 {dimension_numbers = #tpu.dot_dimension_numbers<[1], [0], [0], [1], [0, 0, 1, 1], [], []>} : vector<8x32xf32>, vector<32x32xf32>, vector<8x32xf32> -> vector<8x32xf32>
    %57 = vector.broadcast %5 : vector<1x32xf32> to vector<8x32xf32>
    %58 = arith.addf %56, %57 : vector<8x32xf32>
    %cst_29 = arith.constant dense<0.000000e+00> : vector<8x32xf32>
    %59 = tpu.matmul %51, %3, %cst_29 {dimension_numbers = #tpu.dot_dimension_numbers<[1], [0], [0], [1], [0, 0, 1, 1], [], []>} : vector<8x32xf32>, vector<32x32xf32>, vector<8x32xf32> -> vector<8x32xf32>
    %60 = arith.addf %58, %59 : vector<8x32xf32>
    %61 = math.tanh %60 : vector<8x32xf32>
    %62 = vector.extract_strided_slice %9 {offsets = [40, 0], sizes = [8, 32], strides = [1, 1]} : vector<64x32xf32> to vector<8x32xf32>
    %cst_30 = arith.constant dense<0.000000e+00> : vector<8x32xf32>
    %63 = tpu.matmul %55, %2, %cst_30 {dimension_numbers = #tpu.dot_dimension_numbers<[1], [0], [0], [1], [0, 0, 1, 1], [], []>} : vector<8x32xf32>, vector<32x32xf32>, vector<8x32xf32> -> vector<8x32xf32>
    %64 = arith.addf %62, %63 : vector<8x32xf32>
    %65 = math.tanh %64 : vector<8x32xf32>
    %cst_31 = arith.constant dense<0.000000e+00> : vector<8x32xf32>
    %66 = tpu.matmul %65, %1, %cst_31 {dimension_numbers = #tpu.dot_dimension_numbers<[1], [0], [0], [1], [0, 0, 1, 1], [], []>} : vector<8x32xf32>, vector<32x32xf32>, vector<8x32xf32> -> vector<8x32xf32>
    %67 = vector.broadcast %5 : vector<1x32xf32> to vector<8x32xf32>
    %68 = arith.addf %66, %67 : vector<8x32xf32>
    %cst_32 = arith.constant dense<0.000000e+00> : vector<8x32xf32>
    %69 = tpu.matmul %61, %3, %cst_32 {dimension_numbers = #tpu.dot_dimension_numbers<[1], [0], [0], [1], [0, 0, 1, 1], [], []>} : vector<8x32xf32>, vector<32x32xf32>, vector<8x32xf32> -> vector<8x32xf32>
    %70 = arith.addf %68, %69 : vector<8x32xf32>
    %71 = math.tanh %70 : vector<8x32xf32>
    %72 = vector.extract_strided_slice %9 {offsets = [48, 0], sizes = [8, 32], strides = [1, 1]} : vector<64x32xf32> to vector<8x32xf32>
    %cst_33 = arith.constant dense<0.000000e+00> : vector<8x32xf32>
    %73 = tpu.matmul %65, %2, %cst_33 {dimension_numbers = #tpu.dot_dimension_numbers<[1], [0], [0], [1], [0, 0, 1, 1], [], []>} : vector<8x32xf32>, vector<32x32xf32>, vector<8x32xf32> -> vector<8x32xf32>
    %74 = arith.addf %72, %73 : vector<8x32xf32>
    %75 = math.tanh %74 : vector<8x32xf32>
    %cst_34 = arith.constant dense<0.000000e+00> : vector<8x32xf32>
    %76 = tpu.matmul %75, %1, %cst_34 {dimension_numbers = #tpu.dot_dimension_numbers<[1], [0], [0], [1], [0, 0, 1, 1], [], []>} : vector<8x32xf32>, vector<32x32xf32>, vector<8x32xf32> -> vector<8x32xf32>
    %77 = vector.broadcast %5 : vector<1x32xf32> to vector<8x32xf32>
    %78 = arith.addf %76, %77 : vector<8x32xf32>
    %cst_35 = arith.constant dense<0.000000e+00> : vector<8x32xf32>
    %79 = tpu.matmul %71, %3, %cst_35 {dimension_numbers = #tpu.dot_dimension_numbers<[1], [0], [0], [1], [0, 0, 1, 1], [], []>} : vector<8x32xf32>, vector<32x32xf32>, vector<8x32xf32> -> vector<8x32xf32>
    %80 = arith.addf %78, %79 : vector<8x32xf32>
    %81 = math.tanh %80 : vector<8x32xf32>
    %82 = vector.extract_strided_slice %9 {offsets = [56, 0], sizes = [8, 32], strides = [1, 1]} : vector<64x32xf32> to vector<8x32xf32>
    %cst_36 = arith.constant dense<0.000000e+00> : vector<8x32xf32>
    %83 = tpu.matmul %75, %2, %cst_36 {dimension_numbers = #tpu.dot_dimension_numbers<[1], [0], [0], [1], [0, 0, 1, 1], [], []>} : vector<8x32xf32>, vector<32x32xf32>, vector<8x32xf32> -> vector<8x32xf32>
    %84 = arith.addf %82, %83 : vector<8x32xf32>
    %85 = math.tanh %84 : vector<8x32xf32>
    %cst_37 = arith.constant dense<0.000000e+00> : vector<8x32xf32>
    %86 = tpu.matmul %85, %1, %cst_37 {dimension_numbers = #tpu.dot_dimension_numbers<[1], [0], [0], [1], [0, 0, 1, 1], [], []>} : vector<8x32xf32>, vector<32x32xf32>, vector<8x32xf32> -> vector<8x32xf32>
    %87 = vector.broadcast %5 : vector<1x32xf32> to vector<8x32xf32>
    %88 = arith.addf %86, %87 : vector<8x32xf32>
    %cst_38 = arith.constant dense<0.000000e+00> : vector<8x32xf32>
    %89 = tpu.matmul %81, %3, %cst_38 {dimension_numbers = #tpu.dot_dimension_numbers<[1], [0], [0], [1], [0, 0, 1, 1], [], []>} : vector<8x32xf32>, vector<32x32xf32>, vector<8x32xf32> -> vector<8x32xf32>
    %90 = arith.addf %88, %89 : vector<8x32xf32>
    %91 = math.tanh %90 : vector<8x32xf32>
    %c0_39 = arith.constant 0 : index
    %c0_40 = arith.constant 0 : index
    %92 = vector.load %arg8[%c0_39, %c0_40] : memref<32x128xf32, #tpu.memory_space<vmem>>, vector<32x128xf32>
    %cst_41 = arith.constant dense<0.000000e+00> : vector<8x128xf32>
    %93 = tpu.matmul %91, %92, %cst_41 {dimension_numbers = #tpu.dot_dimension_numbers<[1], [0], [0], [1], [0, 0, 1, 1], [], []>} : vector<8x32xf32>, vector<32x128xf32>, vector<8x128xf32> -> vector<8x128xf32>
    %c0_42 = arith.constant 0 : index
    %c0_43 = arith.constant 0 : index
    %94 = vector.load %arg1[%c0_42, %c0_43] : memref<8x4xf32, #tpu.memory_space<vmem>>, vector<8x4xf32>
    %c0_44 = arith.constant 0 : index
    %c0_45 = arith.constant 0 : index
    %95 = vector.load %arg9[%c0_44, %c0_45] : memref<4x128xf32, #tpu.memory_space<vmem>>, vector<4x128xf32>
    %cst_46 = arith.constant dense<0.000000e+00> : vector<8x128xf32>
    %96 = tpu.matmul %94, %95, %cst_46 {dimension_numbers = #tpu.dot_dimension_numbers<[1], [0], [0], [1], [0, 0, 1, 1], [], []>} : vector<8x4xf32>, vector<4x128xf32>, vector<8x128xf32> -> vector<8x128xf32>
    %97 = arith.addf %93, %96 : vector<8x128xf32>
    %c0_47 = arith.constant 0 : index
    %c0_48 = arith.constant 0 : index
    %98 = vector.load %arg10[%c0_47, %c0_48] : memref<1x128xf32, #tpu.memory_space<vmem>>, vector<1x128xf32>
    %99 = vector.broadcast %98 : vector<1x128xf32> to vector<8x128xf32>
    %100 = arith.addf %97, %99 : vector<8x128xf32>
    %101 = arith.negf %100 : vector<8x128xf32>
    %102 = math.exp %101 : vector<8x128xf32>
    %cst_49 = arith.constant 1.000000e+00 : f32
    %103 = vector.broadcast %cst_49 : f32 to vector<8x128xf32>
    %104 = arith.addf %103, %102 : vector<8x128xf32>
    %105 = arith.divf %103, %104 : vector<8x128xf32>
    %c0_50 = arith.constant 0 : index
    %c0_51 = arith.constant 0 : index
    %106 = vector.load %arg11[%c0_50, %c0_51] : memref<8x128xf32, #tpu.memory_space<vmem>>, vector<8x128xf32>
    tpu.vector_store %arg11[%c0_50, %c0_51], %105 {strides = array<i32>} : memref<8x128xf32, #tpu.memory_space<vmem>>, vector<8x128xf32>,
    return
  }
}

</mosaic_0001>

<llo_original>
// kernel: tpu_custom_call.1
$region0: #{tpu_custom_call.1}
  #allocation0 [shape = 'u32[]', space=smem, size = 0x4, offset = 0x4, fixed_abs, tag = 'smem constant byte address 0x4 - core index']
  #allocation1 [shape = 'u32[144,128]{1,0:T(1,128)}', space=vmem, size = 0x12000, scoped, tag = 'internal scratch']
  %s0 = inlined_call_operand.vmem [shape: f32[64,4], index: 0, kind: input, shape index: {}]
  %s1 = inlined_call_operand.vmem [shape: f32[8,4], index: 1, kind: input, shape index: {}]
  %s2 = inlined_call_operand.vmem [shape: f32[4,32], index: 2, kind: input, shape index: {}]
  %s3 = inlined_call_operand.vmem [shape: f32[32,32], index: 3, kind: input, shape index: {}]
  %s4 = inlined_call_operand.vmem [shape: f32[1,32], index: 4, kind: input, shape index: {}]
  %s5 = inlined_call_operand.vmem [shape: f32[32,32], index: 5, kind: input, shape index: {}]
  %s6 = inlined_call_operand.hbm [shape: f32[32,32], index: 6, kind: input, shape index: {}]
  %s7 = inlined_call_operand.vmem [shape: f32[1,32], index: 7, kind: input, shape index: {}]
  %s8 = inlined_call_operand.hbm [shape: f32[32,128], index: 8, kind: input, shape index: {}]
  %s9 = inlined_call_operand.vmem [shape: f32[4,128], index: 9, kind: input, shape index: {}]
  %s10 = inlined_call_operand.vmem [shape: f32[1,128], index: 10, kind: input, shape index: {}]
  %s11 = inlined_call_operand.hbm [shape: f32[8,128], index: 11, kind: output, shape index: {}]
  %s12 = sld [smem:[#allocation0]]
  $region62: #{tpu_custom_call.1} parent=0
    _
  %s14 = ssub.s32 1, %s12
  %s15 = scalar_select 0, %s14, %s12
  $region1: #{tpu_custom_call.1} parent=0
    #allocation2 [shape = 'u8[16384]{0}', space=vmem, size = 0x4000, scoped, tag = 'input window, operand 6, single buffered']
    #allocation3 [shape = 's32[1]{0}', space=sflag, size = 0x4, scoped, tag = 'scoped memory for tpu_custom_call.1']
    #allocation4 [shape = 's32[1]{0}', space=sflag, size = 0x4, scoped, tag = 'scoped memory for tpu_custom_call.1']
    #allocation5 [shape = 'u8[16384]{0}', space=vmem, size = 0x4000, scoped, tag = 'input window, operand 8, single buffered']
    #allocation6 [shape = 's32[1]{0}', space=sflag, size = 0x4, scoped, tag = 'scoped memory for tpu_custom_call.1']
    #allocation7 [shape = 'u8[4096]{0}', space=vmem, size = 0x1000, scoped, tag = 'output window, operand 0, single buffered']
    %16 = vsyncpa [#allocation3], 0
    %17 = vsyncpa [#allocation6], 0
    %18 = vsyncpa [#allocation4], 0
    // Predicated region
    $region2: #{tpu_custom_call.1} parent=1 // pred_check
      _
    $region3: #{tpu_custom_call.1} parent=1 // pred_check_branch
      %20 = sbr.rel (0) target = $region5
    $region4: #{tpu_custom_call.1} parent=1 // pred_region
      _
    $region5: #{tpu_custom_call.1} parent=1 // pred_fallthru
      _
    // Predicated region
    $region6: #{tpu_custom_call.1} parent=1 // pred_check
      _
    $region7: #{tpu_custom_call.1} parent=1 // pred_check_branch
      %22 = sbr.rel (0) target = $region9
    $region8: #{tpu_custom_call.1} parent=1 // pred_region
      _
    $region9: #{tpu_custom_call.1} parent=1 // pred_fallthru
      _
    // Predicated region
    $region10: #{tpu_custom_call.1} parent=1 // pred_check
      _
    $region11: #{tpu_custom_call.1} parent=1 // pred_check_branch
      %24 = sbr.rel (0) target = $region13
    $region12: #{tpu_custom_call.1} parent=1 // pred_region
      _
    $region13: #{tpu_custom_call.1} parent=1 // pred_fallthru
      _
    // Predicated region
    $region14: #{tpu_custom_call.1} parent=1 // pred_check
      _
    $region15: #{tpu_custom_call.1} parent=1 // pred_check_branch
      %26 = sbr.rel (0) target = $region17
    $region16: #{tpu_custom_call.1} parent=1 // pred_region
      _
    $region17: #{tpu_custom_call.1} parent=1 // pred_fallthru
      _
    // Predicated region
    $region18: #{tpu_custom_call.1} parent=1 // pred_check
      _
    $region19: #{tpu_custom_call.1} parent=1 // pred_check_branch
      %28 = sbr.rel (0) target = $region21
    $region20: #{tpu_custom_call.1} parent=1 // pred_region
      _
    $region21: #{tpu_custom_call.1} parent=1 // pred_fallthru
      _
    // Predicated region
    $region22: #{tpu_custom_call.1} parent=1 // pred_check
      _
    $region23: #{tpu_custom_call.1} parent=1 // pred_check_branch
      %30 = sbr.rel (0) target = $region25
    $region24: #{tpu_custom_call.1} parent=1 // pred_region
      _
    $region25: #{tpu_custom_call.1} parent=1 // pred_fallthru
      _
    // Predicated region
    $region26: #{tpu_custom_call.1} parent=1 // pred_check
      _
    $region27: #{tpu_custom_call.1} parent=1 // pred_check_branch
      %32 = sbr.rel (0) target = $region29
    $region28: #{tpu_custom_call.1} parent=1 // pred_region
      %s34 = ssub.s32 512, 512
      %35 = vsyncadd [#allocation3], %s34
      %s36 = sshll.u32 [#allocation2], 4
      %s37 = int_to_ptr.vmem [resolvable:$true] %s36
      %42 = dma.hbm_to_vmem [thread:$0]  %s6, 512, %s37, [#allocation3], 128, 128, 8
    $region29: #{tpu_custom_call.1} parent=1 // pred_fallthru
      _
    // Predicated region
    $region30: #{tpu_custom_call.1} parent=1 // pred_check
      _
    $region31: #{tpu_custom_call.1} parent=1 // pred_check_branch
      %44 = sbr.rel (0) target = $region33
    $region32: #{tpu_custom_call.1} parent=1 // pred_region
      _
    $region33: #{tpu_custom_call.1} parent=1 // pred_fallthru
      _
    // Predicated region
    $region34: #{tpu_custom_call.1} parent=1 // pred_check
      _
    $region35: #{tpu_custom_call.1} parent=1 // pred_check_branch
      %46 = sbr.rel (0) target = $region37
    $region36: #{tpu_custom_call.1} parent=1 // pred_region
      %s48 = ssub.s32 512, 512
      %49 = vsyncadd [#allocation6], %s48
      %s50 = sshll.u32 [#allocation5], 4
      %s51 = int_to_ptr.vmem [resolvable:$true] %s50
      %56 = dma.hbm_to_vmem [thread:$0]  %s8, 512, %s51, [#allocation6], 128, 128, 8
    $region37: #{tpu_custom_call.1} parent=1 // pred_fallthru
      _
    // Predicated region
    $region38: #{tpu_custom_call.1} parent=1 // pred_check
      _
    $region39: #{tpu_custom_call.1} parent=1 // pred_check_branch
      %58 = sbr.rel (0) target = $region41
    $region40: #{tpu_custom_call.1} parent=1 // pred_region
      _
    $region41: #{tpu_custom_call.1} parent=1 // pred_fallthru
      _
    // Predicated region
    $region42: #{tpu_custom_call.1} parent=1 // pred_check
      _
    $region43: #{tpu_custom_call.1} parent=1 // pred_check_branch
      %60 = sbr.rel (0) target = $region45
    $region44: #{tpu_custom_call.1} parent=1 // pred_region
      _
    $region45: #{tpu_custom_call.1} parent=1 // pred_fallthru
      _
    // Predicated region
    $region46: #{tpu_custom_call.1} parent=1 // pred_check
      _
    $region47: #{tpu_custom_call.1} parent=1 // pred_check_branch
      %62 = sbr.rel (0) target = $region49
    $region48: #{tpu_custom_call.1} parent=1 // pred_region
      %63 = dma.done [#allocation3], 512
    $region49: #{tpu_custom_call.1} parent=1 // pred_fallthru
      _
    // Predicated region
    $region50: #{tpu_custom_call.1} parent=1 // pred_check
      _
    $region51: #{tpu_custom_call.1} parent=1 // pred_check_branch
      %65 = sbr.rel (0) target = $region53
    $region52: #{tpu_custom_call.1} parent=1 // pred_region
      %66 = dma.done [#allocation6], 512
    $region53: #{tpu_custom_call.1} parent=1 // pred_fallthru
      _
    %v67 = vld [vmem:[%s2] sm:$0xf]
    %v68 = vld [vmem:[%s5] sm:$0xff]
    %v69 = vld [vmem:[%s5 + $0x8] sm:$0xff]
    %v70 = vld [vmem:[%s5 + $0x10] sm:$0xff]
    %v71 = vld [vmem:[%s5 + $0x18] sm:$0xff]
    %v72 = vld [vmem:[%s3] sm:$0xff]
    %v73 = vld [vmem:[%s3 + $0x8] sm:$0xff]
    %v74 = vld [vmem:[%s3 + $0x10] sm:$0xff]
    %v75 = vld [vmem:[%s3 + $0x18] sm:$0xff]
    %v76 = vld [vmem:[#allocation2] sm:$0xff]
    %v77 = vld [vmem:[#allocation2 + $0x8] sm:$0xff]
    %v78 = vld [vmem:[#allocation2 + $0x10] sm:$0xff]
    %v79 = vld [vmem:[#allocation2 + $0x18] sm:$0xff]
    %v80 = vld [vmem:[%s4] sm:$0x1]
    %v81 = vld [vmem:[%s7] sm:$0x1]
    %v82 = vld [vmem:[%s0] sm:$0xff]
    %v83 = vld [vmem:[%s0 + $0x8] sm:$0xff]
    %v84 = vld [vmem:[%s0 + $0x10] sm:$0xff]
    %v85 = vld [vmem:[%s0 + $0x18] sm:$0xff]
    %v86 = vld [vmem:[%s0 + $0x20] sm:$0xff]
    %v87 = vld [vmem:[%s0 + $0x28] sm:$0xff]
    %v88 = vld [vmem:[%s0 + $0x30] sm:$0xff]
    %v89 = vld [vmem:[%s0 + $0x38] sm:$0xff]
    %v91 = vlaneseq
    %v92 = vshrl.u32 %v91, 7
    %v93 = vsub.s32 0, %v92
    %v94 = vrot.slane %v80, %v93
    %vm96 = vcmask 31744
    %v98 = vsel %vm96, %v82, 0
    %v101 = vsel %vm96, %v83, 0
    %v104 = vsel %vm96, %v84, 0
    %v107 = vsel %vm96, %v85, 0
    %v110 = vsel %vm96, %v86, 0
    %v113 = vsel %vm96, %v87, 0
    %v116 = vsel %vm96, %v88, 0
    %v119 = vsel %vm96, %v89, 0
    %vm121 = vcmask 1043456
    %v123 = vsel %vm121, %v67, 0
    %125 = vmatprep.subr.mxu0 0.0
    %126 = vmatpush1.msra.mxu0 0.0
    %127 = vmatprep.subr.mxu0 0.0
    %128 = vmatpush1.msra.mxu0 0.0
    %129 = vmatprep.subr.mxu0 0.0
    %130 = vmatpush1.msra.mxu0 0.0
    %131 = vmatprep.subr.mxu0 0.0
    %132 = vmatpush1.msra.mxu0 0.0
    %133 = vmatprep.subr.mxu0 0.0
    %134 = vmatpush1.msra.mxu0 0.0
    %135 = vmatprep.subr.mxu0 0.0
    %136 = vmatpush1.msra.mxu0 0.0
    %137 = vmatprep.subr.mxu0 0.0
    %138 = vmatpush1.msra.mxu0 0.0
    %139 = vmatprep.subr.mxu0 0.0
    %140 = vmatpush1.msra.mxu0 0.0
    %141 = vmatprep.subr.mxu0 0.0
    %142 = vmatpush1.msra.mxu0 0.0
    %143 = vmatprep.subr.mxu0 0.0
    %144 = vmatpush1.msra.mxu0 0.0
    %145 = vmatprep.subr.mxu0 0.0
    %146 = vmatpush1.msra.mxu0 0.0
    %147 = vmatprep.subr.mxu0 0.0
    %148 = vmatpush1.msra.mxu0 0.0
    %149 = vmatprep.subr.mxu0 0.0
    %150 = vmatpush1.msra.mxu0 0.0
    %151 = vmatprep.subr.mxu0 0.0
    %152 = vmatpush1.msra.mxu0 0.0
    %153 = vmatprep.subr.mxu0 0.0
    %154 = vmatpush1.msra.mxu0 0.0
    %155 = vmatprep.subr.mxu0 0.0
    %156 = vmatpush1.msra.mxu0 %v123
    %157 = vmatprep.subr.mxu0 0.0
    %158 = vmatpush2.msra.mxu0 0.0
    %159 = vmatprep.subr.mxu0 0.0
    %160 = vmatpush2.msra.mxu0 0.0
    %161 = vmatprep.subr.mxu0 0.0
    %162 = vmatpush2.msra.mxu0 0.0
    %163 = vmatprep.subr.mxu0 0.0
    %164 = vmatpush2.msra.mxu0 0.0
    %165 = vmatprep.subr.mxu0 0.0
    %166 = vmatpush2.msra.mxu0 0.0
    %167 = vmatprep.subr.mxu0 0.0
    %168 = vmatpush2.msra.mxu0 0.0
    %169 = vmatprep.subr.mxu0 0.0
    %170 = vmatpush2.msra.mxu0 0.0
    %171 = vmatprep.subr.mxu0 0.0
    %172 = vmatpush2.msra.mxu0 0.0
    %173 = vmatprep.subr.mxu0 0.0
    %174 = vmatpush2.msra.mxu0 0.0
    %175 = vmatprep.subr.mxu0 0.0
    %176 = vmatpush2.msra.mxu0 0.0
    %177 = vmatprep.subr.mxu0 0.0
    %178 = vmatpush2.msra.mxu0 0.0
    %179 = vmatprep.subr.mxu0 0.0
    %180 = vmatpush2.msra.mxu0 0.0
    %181 = vmatprep.subr.mxu0 0.0
    %182 = vmatpush2.msra.mxu0 0.0
    %183 = vmatprep.subr.mxu0 0.0
    %184 = vmatpush2.msra.mxu0 0.0
    %185 = vmatprep.subr.mxu0 0.0
    %186 = vmatpush2.msra.mxu0 0.0
    %187 = vmatprep.subr.mxu0 0.0
    %188 = vmatpush2.msra.mxu0 0.0
    %189 = vmatprep.mubr.f32.mxu0 0.0
    %190 = vmatmul.mubr.f32.gmra.mxu0 %v98
    %v191 = vpop.f32.mrf.mxu0
    %v192 = vadd.f32 %v94, %v191
    %v193 = vpop.f32.mrf.mxu0
    %194 = vmatprep.mubr.f32.mxu0 0.0
    %195 = vmatmul.mubr.f32.gmra.mxu0 %v101
    %v196 = vpop.f32.mrf.mxu0
    %v197 = vadd.f32 %v94, %v196
    %v198 = vpop.f32.mrf.mxu0
    %199 = vmatprep.mubr.f32.mxu0 0.0
    %200 = vmatmul.mubr.f32.gmra.mxu0 %v104
    %v201 = vpop.f32.mrf.mxu0
    %v202 = vadd.f32 %v94, %v201
    %v203 = vpop.f32.mrf.mxu0
    %204 = vmatprep.mubr.f32.mxu0 0.0
    %205 = vmatmul.mubr.f32.gmra.mxu0 %v107
    %v206 = vpop.f32.mrf.mxu0
    %v207 = vadd.f32 %v94, %v206
    %v208 = vpop.f32.mrf.mxu0
    %209 = vmatprep.mubr.f32.mxu0 0.0
    %210 = vmatmul.mubr.f32.gmra.mxu0 %v110
    %v211 = vpop.f32.mrf.mxu0
    %v212 = vadd.f32 %v94, %v211
    %v213 = vpop.f32.mrf.mxu0
    %214 = vmatprep.mubr.f32.mxu0 0.0
    %215 = vmatmul.mubr.f32.gmra.mxu0 %v113
    %v216 = vpop.f32.mrf.mxu0
    %v217 = vadd.f32 %v94, %v216
    %v218 = vpop.f32.mrf.mxu0
    %219 = vmatprep.mubr.f32.mxu0 0.0
    %220 = vmatmul.mubr.f32.gmra.mxu0 %v116
    %v221 = vpop.f32.mrf.mxu0
    %v222 = vadd.f32 %v94, %v221
    %v223 = vpop.f32.mrf.mxu0
    %224 = vmatprep.mubr.f32.mxu0 0.0
    %225 = vmatmul.mubr.f32.gmra.mxu0 %v119
    %v226 = vpop.f32.mrf.mxu0
    %v227 = vadd.f32 %v94, %v226
    %v228 = vpop.f32.mrf.mxu0
    %229 = vdwg.mxu0
    %vm230 = vcmask 261120
    %v232 = vsel %vm230, 0.0, 0
    %234 = vmatprep.subr.mxu0 0.0
    %235 = vmatpush1.msra.mxu0 0.0
    %236 = vmatprep.subr.mxu0 0.0
    %237 = vmatpush1.msra.mxu0 0.0
    %238 = vmatprep.subr.mxu0 0.0
    %239 = vmatpush1.msra.mxu0 0.0
    %240 = vmatprep.subr.mxu0 0.0
    %241 = vmatpush1.msra.mxu0 0.0
    %242 = vmatprep.subr.mxu0 0.0
    %243 = vmatpush1.msra.mxu0 0.0
    %244 = vmatprep.subr.mxu0 0.0
    %245 = vmatpush1.msra.mxu0 0.0
    %246 = vmatprep.subr.mxu0 0.0
    %247 = vmatpush1.msra.mxu0 0.0
    %248 = vmatprep.subr.mxu0 0.0
    %249 = vmatpush1.msra.mxu0 0.0
    %250 = vmatprep.subr.mxu0 0.0
    %251 = vmatpush1.msra.mxu0 0.0
    %252 = vmatprep.subr.mxu0 0.0
    %253 = vmatpush1.msra.mxu0 0.0
    %254 = vmatprep.subr.mxu0 0.0
    %255 = vmatpush1.msra.mxu0 0.0
    %256 = vmatprep.subr.mxu0 0.0
    %257 = vmatpush1.msra.mxu0 0.0
    %258 = vmatprep.subr.mxu0 0.0
    %259 = vmatpush1.msra.mxu0 %v75
    %260 = vmatprep.subr.mxu0 0.0
    %261 = vmatpush1.msra.mxu0 %v74
    %262 = vmatprep.subr.mxu0 0.0
    %263 = vmatpush1.msra.mxu0 %v73
    %264 = vmatprep.subr.mxu0 0.0
    %265 = vmatpush1.msra.mxu0 %v72
    %266 = vmatprep.subr.mxu0 0.0
    %267 = vmatpush2.msra.mxu0 0.0
    %268 = vmatprep.subr.mxu0 0.0
    %269 = vmatpush2.msra.mxu0 0.0
    %270 = vmatprep.subr.mxu0 0.0
    %271 = vmatpush2.msra.mxu0 0.0
    %272 = vmatprep.subr.mxu0 0.0
    %273 = vmatpush2.msra.mxu0 0.0
    %274 = vmatprep.subr.mxu0 0.0
    %275 = vmatpush2.msra.mxu0 0.0
    %276 = vmatprep.subr.mxu0 0.0
    %277 = vmatpush2.msra.mxu0 0.0
    %278 = vmatprep.subr.mxu0 0.0
    %279 = vmatpush2.msra.mxu0 0.0
    %280 = vmatprep.subr.mxu0 0.0
    %281 = vmatpush2.msra.mxu0 0.0
    %282 = vmatprep.subr.mxu0 0.0
    %283 = vmatpush2.msra.mxu0 0.0
    %284 = vmatprep.subr.mxu0 0.0
    %285 = vmatpush2.msra.mxu0 0.0
    %286 = vmatprep.subr.mxu0 0.0
    %287 = vmatpush2.msra.mxu0 0.0
    %288 = vmatprep.subr.mxu0 0.0
    %289 = vmatpush2.msra.mxu0 0.0
    %290 = vmatprep.subr.mxu0 0.0
    %291 = vmatpush2.msra.mxu0 0.0
    %292 = vmatprep.subr.mxu0 0.0
    %293 = vmatpush2.msra.mxu0 0.0
    %294 = vmatprep.subr.mxu0 0.0
    %295 = vmatpush2.msra.mxu0 0.0
    %296 = vmatprep.subr.mxu0 0.0
    %297 = vmatpush2.msra.mxu0 0.0
    %298 = vmatprep.mubr.f32.mxu0 0.0
    %299 = vmatmul.mubr.f32.gmra.mxu0 %v232
    %v300 = vpop.f32.mrf.mxu0
    %v301 = vadd.f32 0.0, %v300
    %v302 = vpop.f32.mrf.mxu0
    %303 = vdwg.mxu0
    %v304 = vadd.f32 %v192, %v301
    %v305 = vtanh.pop %v304
    %v307 = vlaneseq
    %v308 = vshrl.u32 %v307, 7
    %v309 = vsub.s32 0, %v308
    %v310 = vrot.slane %v81, %v309
    %v313 = vsel %vm230, %v305, 0
    %315 = vmatprep.subr.mxu0 0.0
    %316 = vmatpush1.msra.mxu0 0.0
    %317 = vmatprep.subr.mxu0 0.0
    %318 = vmatpush1.msra.mxu0 0.0
    %319 = vmatprep.subr.mxu0 0.0
    %320 = vmatpush1.msra.mxu0 0.0
    %321 = vmatprep.subr.mxu0 0.0
    %322 = vmatpush1.msra.mxu0 0.0
    %323 = vmatprep.subr.mxu0 0.0
    %324 = vmatpush1.msra.mxu0 0.0
    %325 = vmatprep.subr.mxu0 0.0
    %326 = vmatpush1.msra.mxu0 0.0
    %327 = vmatprep.subr.mxu0 0.0
    %328 = vmatpush1.msra.mxu0 0.0
    %329 = vmatprep.subr.mxu0 0.0
    %330 = vmatpush1.msra.mxu0 0.0
    %331 = vmatprep.subr.mxu0 0.0
    %332 = vmatpush1.msra.mxu0 0.0
    %333 = vmatprep.subr.mxu0 0.0
    %334 = vmatpush1.msra.mxu0 0.0
    %335 = vmatprep.subr.mxu0 0.0
    %336 = vmatpush1.msra.mxu0 0.0
    %337 = vmatprep.subr.mxu0 0.0
    %338 = vmatpush1.msra.mxu0 0.0
    %339 = vmatprep.subr.mxu0 0.0
    %340 = vmatpush1.msra.mxu0 %v71
    %341 = vmatprep.subr.mxu0 0.0
    %342 = vmatpush1.msra.mxu0 %v70
    %343 = vmatprep.subr.mxu0 0.0
    %344 = vmatpush1.msra.mxu0 %v69
    %345 = vmatprep.subr.mxu0 0.0
    %346 = vmatpush1.msra.mxu0 %v68
    %347 = vmatprep.subr.mxu0 0.0
    %348 = vmatpush2.msra.mxu0 0.0
    %349 = vmatprep.subr.mxu0 0.0
    %350 = vmatpush2.msra.mxu0 0.0
    %351 = vmatprep.subr.mxu0 0.0
    %352 = vmatpush2.msra.mxu0 0.0
    %353 = vmatprep.subr.mxu0 0.0
    %354 = vmatpush2.msra.mxu0 0.0
    %355 = vmatprep.subr.mxu0 0.0
    %356 = vmatpush2.msra.mxu0 0.0
    %357 = vmatprep.subr.mxu0 0.0
    %358 = vmatpush2.msra.mxu0 0.0
    %359 = vmatprep.subr.mxu0 0.0
    %360 = vmatpush2.msra.mxu0 0.0
    %361 = vmatprep.subr.mxu0 0.0
    %362 = vmatpush2.msra.mxu0 0.0
    %363 = vmatprep.subr.mxu0 0.0
    %364 = vmatpush2.msra.mxu0 0.0
    %365 = vmatprep.subr.mxu0 0.0
    %366 = vmatpush2.msra.mxu0 0.0
    %367 = vmatprep.subr.mxu0 0.0
    %368 = vmatpush2.msra.mxu0 0.0
    %369 = vmatprep.subr.mxu0 0.0
    %370 = vmatpush2.msra.mxu0 0.0
    %371 = vmatprep.subr.mxu0 0.0
    %372 = vmatpush2.msra.mxu0 0.0
    %373 = vmatprep.subr.mxu0 0.0
    %374 = vmatpush2.msra.mxu0 0.0
    %375 = vmatprep.subr.mxu0 0.0
    %376 = vmatpush2.msra.mxu0 0.0
    %377 = vmatprep.subr.mxu0 0.0
    %378 = vmatpush2.msra.mxu0 0.0
    %379 = vmatprep.mubr.f32.mxu0 0.0
    %380 = vmatmul.mubr.f32.gmra.mxu0 %v313
    %v381 = vpop.f32.mrf.mxu0
    %v382 = vadd.f32 %v310, %v381
    %v383 = vpop.f32.mrf.mxu0
    %384 = vdwg.mxu0
    %385 = vmatprep.subr.mxu0 0.0
    %386 = vmatpush1.msra.mxu0 0.0
    %387 = vmatprep.subr.mxu0 0.0
    %388 = vmatpush1.msra.mxu0 0.0
    %389 = vmatprep.subr.mxu0 0.0
    %390 = vmatpush1.msra.mxu0 0.0
    %391 = vmatprep.subr.mxu0 0.0
    %392 = vmatpush1.msra.mxu0 0.0
    %393 = vmatprep.subr.mxu0 0.0
    %394 = vmatpush1.msra.mxu0 0.0
    %395 = vmatprep.subr.mxu0 0.0
    %396 = vmatpush1.msra.mxu0 0.0
    %397 = vmatprep.subr.mxu0 0.0
    %398 = vmatpush1.msra.mxu0 0.0
    %399 = vmatprep.subr.mxu0 0.0
    %400 = vmatpush1.msra.mxu0 0.0
    %401 = vmatprep.subr.mxu0 0.0
    %402 = vmatpush1.msra.mxu0 0.0
    %403 = vmatprep.subr.mxu0 0.0
    %404 = vmatpush1.msra.mxu0 0.0
    %405 = vmatprep.subr.mxu0 0.0
    %406 = vmatpush1.msra.mxu0 0.0
    %407 = vmatprep.subr.mxu0 0.0
    %408 = vmatpush1.msra.mxu0 0.0
    %409 = vmatprep.subr.mxu0 0.0
    %410 = vmatpush1.msra.mxu0 %v79
    %411 = vmatprep.subr.mxu0 0.0
    %412 = vmatpush1.msra.mxu0 %v78
    %413 = vmatprep.subr.mxu0 0.0
    %414 = vmatpush1.msra.mxu0 %v77
    %415 = vmatprep.subr.mxu0 0.0
    %416 = vmatpush1.msra.mxu0 %v76
    %417 = vmatprep.subr.mxu0 0.0
    %418 = vmatpush2.msra.mxu0 0.0
    %419 = vmatprep.subr.mxu0 0.0
    %420 = vmatpush2.msra.mxu0 0.0
    %421 = vmatprep.subr.mxu0 0.0
    %422 = vmatpush2.msra.mxu0 0.0
    %423 = vmatprep.subr.mxu0 0.0
    %424 = vmatpush2.msra.mxu0 0.0
    %425 = vmatprep.subr.mxu0 0.0
    %426 = vmatpush2.msra.mxu0 0.0
    %427 = vmatprep.subr.mxu0 0.0
    %428 = vmatpush2.msra.mxu0 0.0
    %429 = vmatprep.subr.mxu0 0.0
    %430 = vmatpush2.msra.mxu0 0.0
    %431 = vmatprep.subr.mxu0 0.0
    %432 = vmatpush2.msra.mxu0 0.0
    %433 = vmatprep.subr.mxu0 0.0
    %434 = vmatpush2.msra.mxu0 0.0
    %435 = vmatprep.subr.mxu0 0.0
    %436 = vmatpush2.msra.mxu0 0.0
    %437 = vmatprep.subr.mxu0 0.0
    %438 = vmatpush2.msra.mxu0 0.0
    %439 = vmatprep.subr.mxu0 0.0
    %440 = vmatpush2.msra.mxu0 0.0
    %441 = vmatprep.subr.mxu0 0.0
    %442 = vmatpush2.msra.mxu0 0.0
    %443 = vmatprep.subr.mxu0 0.0
    %444 = vmatpush2.msra.mxu0 0.0
    %445 = vmatprep.subr.mxu0 0.0
    %446 = vmatpush2.msra.mxu0 0.0
    %447 = vmatprep.subr.mxu0 0.0
    %448 = vmatpush2.msra.mxu0 0.0
    %449 = vmatprep.mubr.f32.mxu0 0.0
    %450 = vmatmul.mubr.f32.gmra.mxu0 %v232
    %v451 = vpop.f32.mrf.mxu0
    %v452 = vadd.f32 0.0, %v451
    %v453 = vpop.f32.mrf.mxu0
    %454 = vdwg.mxu0
    %v455 = vadd.f32 %v382, %v452
    %v456 = vtanh.pop %v455
    %457 = vmatprep.subr.mxu0 0.0
    %458 = vmatpush1.msra.mxu0 0.0
    %459 = vmatprep.subr.mxu0 0.0
    %460 = vmatpush1.msra.mxu0 0.0
    %461 = vmatprep.subr.mxu0 0.0
    %462 = vmatpush1.msra.mxu0 0.0
    %463 = vmatprep.subr.mxu0 0.0
    %464 = vmatpush1.msra.mxu0 0.0
    %465 = vmatprep.subr.mxu0 0.0
    %466 = vmatpush1.msra.mxu0 0.0
    %467 = vmatprep.subr.mxu0 0.0
    %468 = vmatpush1.msra.mxu0 0.0
    %469 = vmatprep.subr.mxu0 0.0
    %470 = vmatpush1.msra.mxu0 0.0
    %471 = vmatprep.subr.mxu0 0.0
    %472 = vmatpush1.msra.mxu0 0.0
    %473 = vmatprep.subr.mxu0 0.0
    %474 = vmatpush1.msra.mxu0 0.0
    %475 = vmatprep.subr.mxu0 0.0
    %476 = vmatpush1.msra.mxu0 0.0
    %477 = vmatprep.subr.mxu0 0.0
    %478 = vmatpush1.msra.mxu0 0.0
    %479 = vmatprep.subr.mxu0 0.0
    %480 = vmatpush1.msra.mxu0 0.0
    %481 = vmatprep.subr.mxu0 0.0
    %482 = vmatpush1.msra.mxu0 %v75
    %483 = vmatprep.subr.mxu0 0.0
    %484 = vmatpush1.msra.mxu0 %v74
    %485 = vmatprep.subr.mxu0 0.0
    %486 = vmatpush1.msra.mxu0 %v73
    %487 = vmatprep.subr.mxu0 0.0
    %488 = vmatpush1.msra.mxu0 %v72
    %489 = vmatprep.subr.mxu0 0.0
    %490 = vmatpush2.msra.mxu0 0.0
    %491 = vmatprep.subr.mxu0 0.0
    %492 = vmatpush2.msra.mxu0 0.0
    %493 = vmatprep.subr.mxu0 0.0
    %494 = vmatpush2.msra.mxu0 0.0
    %495 = vmatprep.subr.mxu0 0.0
    %496 = vmatpush2.msra.mxu0 0.0
    %497 = vmatprep.subr.mxu0 0.0
    %498 = vmatpush2.msra.mxu0 0.0
    %499 = vmatprep.subr.mxu0 0.0
    %500 = vmatpush2.msra.mxu0 0.0
    %501 = vmatprep.subr.mxu0 0.0
    %502 = vmatpush2.msra.mxu0 0.0
    %503 = vmatprep.subr.mxu0 0.0
    %504 = vmatpush2.msra.mxu0 0.0
    %505 = vmatprep.subr.mxu0 0.0
    %506 = vmatpush2.msra.mxu0 0.0
    %507 = vmatprep.subr.mxu0 0.0
    %508 = vmatpush2.msra.mxu0 0.0
    %509 = vmatprep.subr.mxu0 0.0
    %510 = vmatpush2.msra.mxu0 0.0
    %511 = vmatprep.subr.mxu0 0.0
    %512 = vmatpush2.msra.mxu0 0.0
    %513 = vmatprep.subr.mxu0 0.0
    %514 = vmatpush2.msra.mxu0 0.0
    %515 = vmatprep.subr.mxu0 0.0
    %516 = vmatpush2.msra.mxu0 0.0
    %517 = vmatprep.subr.mxu0 0.0
    %518 = vmatpush2.msra.mxu0 0.0
    %519 = vmatprep.subr.mxu0 0.0
    %520 = vmatpush2.msra.mxu0 0.0
    %521 = vmatprep.mubr.f32.mxu0 0.0
    %522 = vmatmul.mubr.f32.gmra.mxu0 %v313
    %v523 = vpop.f32.mrf.mxu0
    %v524 = vadd.f32 0.0, %v523
    %v525 = vpop.f32.mrf.mxu0
    %526 = vdwg.mxu0
    %v527 = vadd.f32 %v197, %v524
    %v528 = vtanh.pop %v527
    %v530 = vsel %vm230, %v528, 0
    %532 = vmatprep.subr.mxu0 0.0
    %533 = vmatpush1.msra.mxu0 0.0
    %534 = vmatprep.subr.mxu0 0.0
    %535 = vmatpush1.msra.mxu0 0.0
    %536 = vmatprep.subr.mxu0 0.0
    %537 = vmatpush1.msra.mxu0 0.0
    %538 = vmatprep.subr.mxu0 0.0
    %539 = vmatpush1.msra.mxu0 0.0
    %540 = vmatprep.subr.mxu0 0.0
    %541 = vmatpush1.msra.mxu0 0.0
    %542 = vmatprep.subr.mxu0 0.0
    %543 = vmatpush1.msra.mxu0 0.0
    %544 = vmatprep.subr.mxu0 0.0
    %545 = vmatpush1.msra.mxu0 0.0
    %546 = vmatprep.subr.mxu0 0.0
    %547 = vmatpush1.msra.mxu0 0.0
    %548 = vmatprep.subr.mxu0 0.0
    %549 = vmatpush1.msra.mxu0 0.0
    %550 = vmatprep.subr.mxu0 0.0
    %551 = vmatpush1.msra.mxu0 0.0
    %552 = vmatprep.subr.mxu0 0.0
    %553 = vmatpush1.msra.mxu0 0.0
    %554 = vmatprep.subr.mxu0 0.0
    %555 = vmatpush1.msra.mxu0 0.0
    %556 = vmatprep.subr.mxu0 0.0
    %557 = vmatpush1.msra.mxu0 %v71
    %558 = vmatprep.subr.mxu0 0.0
    %559 = vmatpush1.msra.mxu0 %v70
    %560 = vmatprep.subr.mxu0 0.0
    %561 = vmatpush1.msra.mxu0 %v69
    %562 = vmatprep.subr.mxu0 0.0
    %563 = vmatpush1.msra.mxu0 %v68
    %564 = vmatprep.subr.mxu0 0.0
    %565 = vmatpush2.msra.mxu0 0.0
    %566 = vmatprep.subr.mxu0 0.0
    %567 = vmatpush2.msra.mxu0 0.0
    %568 = vmatprep.subr.mxu0 0.0
    %569 = vmatpush2.msra.mxu0 0.0
    %570 = vmatprep.subr.mxu0 0.0
    %571 = vmatpush2.msra.mxu0 0.0
    %572 = vmatprep.subr.mxu0 0.0
    %573 = vmatpush2.msra.mxu0 0.0
    %574 = vmatprep.subr.mxu0 0.0
    %575 = vmatpush2.msra.mxu0 0.0
    %576 = vmatprep.subr.mxu0 0.0
    %577 = vmatpush2.msra.mxu0 0.0
    %578 = vmatprep.subr.mxu0 0.0
    %579 = vmatpush2.msra.mxu0 0.0
    %580 = vmatprep.subr.mxu0 0.0
    %581 = vmatpush2.msra.mxu0 0.0
    %582 = vmatprep.subr.mxu0 0.0
    %583 = vmatpush2.msra.mxu0 0.0
    %584 = vmatprep.subr.mxu0 0.0
    %585 = vmatpush2.msra.mxu0 0.0
    %586 = vmatprep.subr.mxu0 0.0
    %587 = vmatpush2.msra.mxu0 0.0
    %588 = vmatprep.subr.mxu0 0.0
    %589 = vmatpush2.msra.mxu0 0.0
    %590 = vmatprep.subr.mxu0 0.0
    %591 = vmatpush2.msra.mxu0 0.0
    %592 = vmatprep.subr.mxu0 0.0
    %593 = vmatpush2.msra.mxu0 0.0
    %594 = vmatprep.subr.mxu0 0.0
    %595 = vmatpush2.msra.mxu0 0.0
    %596 = vmatprep.mubr.f32.mxu0 0.0
    %597 = vmatmul.mubr.f32.gmra.mxu0 %v530
    %v598 = vpop.f32.mrf.mxu0
    %v599 = vadd.f32 %v310, %v598
    %v600 = vpop.f32.mrf.mxu0
    %601 = vdwg.mxu0
    %v603 = vsel %vm230, %v456, 0
    %605 = vmatprep.subr.mxu0 0.0
    %606 = vmatpush1.msra.mxu0 0.0
    %607 = vmatprep.subr.mxu0 0.0
    %608 = vmatpush1.msra.mxu0 0.0
    %609 = vmatprep.subr.mxu0 0.0
    %610 = vmatpush1.msra.mxu0 0.0
    %611 = vmatprep.subr.mxu0 0.0
    %612 = vmatpush1.msra.mxu0 0.0
    %613 = vmatprep.subr.mxu0 0.0
    %614 = vmatpush1.msra.mxu0 0.0
    %615 = vmatprep.subr.mxu0 0.0
    %616 = vmatpush1.msra.mxu0 0.0
    %617 = vmatprep.subr.mxu0 0.0
    %618 = vmatpush1.msra.mxu0 0.0
    %619 = vmatprep.subr.mxu0 0.0
    %620 = vmatpush1.msra.mxu0 0.0
    %621 = vmatprep.subr.mxu0 0.0
    %622 = vmatpush1.msra.mxu0 0.0
    %623 = vmatprep.subr.mxu0 0.0
    %624 = vmatpush1.msra.mxu0 0.0
    %625 = vmatprep.subr.mxu0 0.0
    %626 = vmatpush1.msra.mxu0 0.0
    %627 = vmatprep.subr.mxu0 0.0
    %628 = vmatpush1.msra.mxu0 0.0
    %629 = vmatprep.subr.mxu0 0.0
    %630 = vmatpush1.msra.mxu0 %v79
    %631 = vmatprep.subr.mxu0 0.0
    %632 = vmatpush1.msra.mxu0 %v78
    %633 = vmatprep.subr.mxu0 0.0
    %634 = vmatpush1.msra.mxu0 %v77
    %635 = vmatprep.subr.mxu0 0.0
    %636 = vmatpush1.msra.mxu0 %v76
    %637 = vmatprep.subr.mxu0 0.0
    %638 = vmatpush2.msra.mxu0 0.0
    %639 = vmatprep.subr.mxu0 0.0
    %640 = vmatpush2.msra.mxu0 0.0
    %641 = vmatprep.subr.mxu0 0.0
    %642 = vmatpush2.msra.mxu0 0.0
    %643 = vmatprep.subr.mxu0 0.0
    %644 = vmatpush2.msra.mxu0 0.0
    %645 = vmatprep.subr.mxu0 0.0
    %646 = vmatpush2.msra.mxu0 0.0
    %647 = vmatprep.subr.mxu0 0.0
    %648 = vmatpush2.msra.mxu0 0.0
    %649 = vmatprep.subr.mxu0 0.0
    %650 = vmatpush2.msra.mxu0 0.0
    %651 = vmatprep.subr.mxu0 0.0
    %652 = vmatpush2.msra.mxu0 0.0
    %653 = vmatprep.subr.mxu0 0.0
    %654 = vmatpush2.msra.mxu0 0.0
    %655 = vmatprep.subr.mxu0 0.0
    %656 = vmatpush2.msra.mxu0 0.0
    %657 = vmatprep.subr.mxu0 0.0
    %658 = vmatpush2.msra.mxu0 0.0
    %659 = vmatprep.subr.mxu0 0.0
    %660 = vmatpush2.msra.mxu0 0.0
    %661 = vmatprep.subr.mxu0 0.0
    %662 = vmatpush2.msra.mxu0 0.0
    %663 = vmatprep.subr.mxu0 0.0
    %664 = vmatpush2.msra.mxu0 0.0
    %665 = vmatprep.subr.mxu0 0.0
    %666 = vmatpush2.msra.mxu0 0.0
    %667 = vmatprep.subr.mxu0 0.0
    %668 = vmatpush2.msra.mxu0 0.0
    %669 = vmatprep.mubr.f32.mxu0 0.0
    %670 = vmatmul.mubr.f32.gmra.mxu0 %v603
    %v671 = vpop.f32.mrf.mxu0
    %v672 = vadd.f32 0.0, %v671
    %v673 = vpop.f32.mrf.mxu0
    %674 = vdwg.mxu0
    %v675 = vadd.f32 %v599, %v672
    %v676 = vtanh.pop %v675
    %677 = vmatprep.subr.mxu0 0.0
    %678 = vmatpush1.msra.mxu0 0.0
    %679 = vmatprep.subr.mxu0 0.0
    %680 = vmatpush1.msra.mxu0 0.0
    %681 = vmatprep.subr.mxu0 0.0
    %682 = vmatpush1.msra.mxu0 0.0
    %683 = vmatprep.subr.mxu0 0.0
    %684 = vmatpush1.msra.mxu0 0.0
    %685 = vmatprep.subr.mxu0 0.0
    %686 = vmatpush1.msra.mxu0 0.0
    %687 = vmatprep.subr.mxu0 0.0
    %688 = vmatpush1.msra.mxu0 0.0
    %689 = vmatprep.subr.mxu0 0.0
    %690 = vmatpush1.msra.mxu0 0.0
    %691 = vmatprep.subr.mxu0 0.0
    %692 = vmatpush1.msra.mxu0 0.0
    %693 = vmatprep.subr.mxu0 0.0
    %694 = vmatpush1.msra.mxu0 0.0
    %695 = vmatprep.subr.mxu0 0.0
    %696 = vmatpush1.msra.mxu0 0.0
    %697 = vmatprep.subr.mxu0 0.0
    %698 = vmatpush1.msra.mxu0 0.0
    %699 = vmatprep.subr.mxu0 0.0
    %700 = vmatpush1.msra.mxu0 0.0
    %701 = vmatprep.subr.mxu0 0.0
    %702 = vmatpush1.msra.mxu0 %v75
    %703 = vmatprep.subr.mxu0 0.0
    %704 = vmatpush1.msra.mxu0 %v74
    %705 = vmatprep.subr.mxu0 0.0
    %706 = vmatpush1.msra.mxu0 %v73
    %707 = vmatprep.subr.mxu0 0.0
    %708 = vmatpush1.msra.mxu0 %v72
    %709 = vmatprep.subr.mxu0 0.0
    %710 = vmatpush2.msra.mxu0 0.0
    %711 = vmatprep.subr.mxu0 0.0
    %712 = vmatpush2.msra.mxu0 0.0
    %713 = vmatprep.subr.mxu0 0.0
    %714 = vmatpush2.msra.mxu0 0.0
    %715 = vmatprep.subr.mxu0 0.0
    %716 = vmatpush2.msra.mxu0 0.0
    %717 = vmatprep.subr.mxu0 0.0
    %718 = vmatpush2.msra.mxu0 0.0
    %719 = vmatprep.subr.mxu0 0.0
    %720 = vmatpush2.msra.mxu0 0.0
    %721 = vmatprep.subr.mxu0 0.0
    %722 = vmatpush2.msra.mxu0 0.0
    %723 = vmatprep.subr.mxu0 0.0
    %724 = vmatpush2.msra.mxu0 0.0
    %725 = vmatprep.subr.mxu0 0.0
    %726 = vmatpush2.msra.mxu0 0.0
    %727 = vmatprep.subr.mxu0 0.0
    %728 = vmatpush2.msra.mxu0 0.0
    %729 = vmatprep.subr.mxu0 0.0
    %730 = vmatpush2.msra.mxu0 0.0
    %731 = vmatprep.subr.mxu0 0.0
    %732 = vmatpush2.msra.mxu0 0.0
    %733 = vmatprep.subr.mxu0 0.0
    %734 = vmatpush2.msra.mxu0 0.0
    %735 = vmatprep.subr.mxu0 0.0
    %736 = vmatpush2.msra.mxu0 0.0
    %737 = vmatprep.subr.mxu0 0.0
    %738 = vmatpush2.msra.mxu0 0.0
    %739 = vmatprep.subr.mxu0 0.0
    %740 = vmatpush2.msra.mxu0 0.0
    %741 = vmatprep.mubr.f32.mxu0 0.0
    %742 = vmatmul.mubr.f32.gmra.mxu0 %v530
    %v743 = vpop.f32.mrf.mxu0
    %v744 = vadd.f32 0.0, %v743
    %v745 = vpop.f32.mrf.mxu0
    %746 = vdwg.mxu0
    %v747 = vadd.f32 %v202, %v744
    %v748 = vtanh.pop %v747
    %v750 = vsel %vm230, %v748, 0
    %752 = vmatprep.subr.mxu0 0.0
    %753 = vmatpush1.msra.mxu0 0.0
    %754 = vmatprep.subr.mxu0 0.0
    %755 = vmatpush1.msra.mxu0 0.0
    %756 = vmatprep.subr.mxu0 0.0
    %757 = vmatpush1.msra.mxu0 0.0
    %758 = vmatprep.subr.mxu0 0.0
    %759 = vmatpush1.msra.mxu0 0.0
    %760 = vmatprep.subr.mxu0 0.0
    %761 = vmatpush1.msra.mxu0 0.0
    %762 = vmatprep.subr.mxu0 0.0
    %763 = vmatpush1.msra.mxu0 0.0
    %764 = vmatprep.subr.mxu0 0.0
    %765 = vmatpush1.msra.mxu0 0.0
    %766 = vmatprep.subr.mxu0 0.0
    %767 = vmatpush1.msra.mxu0 0.0
    %768 = vmatprep.subr.mxu0 0.0
    %769 = vmatpush1.msra.mxu0 0.0
    %770 = vmatprep.subr.mxu0 0.0
    %771 = vmatpush1.msra.mxu0 0.0
    %772 = vmatprep.subr.mxu0 0.0
    %773 = vmatpush1.msra.mxu0 0.0
    %774 = vmatprep.subr.mxu0 0.0
    %775 = vmatpush1.msra.mxu0 0.0
    %776 = vmatprep.subr.mxu0 0.0
    %777 = vmatpush1.msra.mxu0 %v71
    %778 = vmatprep.subr.mxu0 0.0
    %779 = vmatpush1.msra.mxu0 %v70
    %780 = vmatprep.subr.mxu0 0.0
    %781 = vmatpush1.msra.mxu0 %v69
    %782 = vmatprep.subr.mxu0 0.0
    %783 = vmatpush1.msra.mxu0 %v68
    %784 = vmatprep.subr.mxu0 0.0
    %785 = vmatpush2.msra.mxu0 0.0
    %786 = vmatprep.subr.mxu0 0.0
    %787 = vmatpush2.msra.mxu0 0.0
    %788 = vmatprep.subr.mxu0 0.0
    %789 = vmatpush2.msra.mxu0 0.0
    %790 = vmatprep.subr.mxu0 0.0
    %791 = vmatpush2.msra.mxu0 0.0
    %792 = vmatprep.subr.mxu0 0.0
    %793 = vmatpush2.msra.mxu0 0.0
    %794 = vmatprep.subr.mxu0 0.0
    %795 = vmatpush2.msra.mxu0 0.0
    %796 = vmatprep.subr.mxu0 0.0
    %797 = vmatpush2.msra.mxu0 0.0
    %798 = vmatprep.subr.mxu0 0.0
    %799 = vmatpush2.msra.mxu0 0.0
    %800 = vmatprep.subr.mxu0 0.0
    %801 = vmatpush2.msra.mxu0 0.0
    %802 = vmatprep.subr.mxu0 0.0
    %803 = vmatpush2.msra.mxu0 0.0
    %804 = vmatprep.subr.mxu0 0.0
    %805 = vmatpush2.msra.mxu0 0.0
    %806 = vmatprep.subr.mxu0 0.0
    %807 = vmatpush2.msra.mxu0 0.0
    %808 = vmatprep.subr.mxu0 0.0
    %809 = vmatpush2.msra.mxu0 0.0
    %810 = vmatprep.subr.mxu0 0.0
    %811 = vmatpush2.msra.mxu0 0.0
    %812 = vmatprep.subr.mxu0 0.0
    %813 = vmatpush2.msra.mxu0 0.0
    %814 = vmatprep.subr.mxu0 0.0
    %815 = vmatpush2.msra.mxu0 0.0
    %816 = vmatprep.mubr.f32.mxu0 0.0
    %817 = vmatmul.mubr.f32.gmra.mxu0 %v750
    %v818 = vpop.f32.mrf.mxu0
    %v819 = vadd.f32 %v310, %v818
    %v820 = vpop.f32.mrf.mxu0
    %821 = vdwg.mxu0
    %v823 = vsel %vm230, %v676, 0
    %825 = vmatprep.subr.mxu0 0.0
    %826 = vmatpush1.msra.mxu0 0.0
    %827 = vmatprep.subr.mxu0 0.0
    %828 = vmatpush1.msra.mxu0 0.0
    %829 = vmatprep.subr.mxu0 0.0
    %830 = vmatpush1.msra.mxu0 0.0
    %831 = vmatprep.subr.mxu0 0.0
    %832 = vmatpush1.msra.mxu0 0.0
    %833 = vmatprep.subr.mxu0 0.0
    %834 = vmatpush1.msra.mxu0 0.0
    %835 = vmatprep.subr.mxu0 0.0
    %836 = vmatpush1.msra.mxu0 0.0
    %837 = vmatprep.subr.mxu0 0.0
    %838 = vmatpush1.msra.mxu0 0.0
    %839 = vmatprep.subr.mxu0 0.0
    %840 = vmatpush1.msra.mxu0 0.0
    %841 = vmatprep.subr.mxu0 0.0
    %842 = vmatpush1.msra.mxu0 0.0
    %843 = vmatprep.subr.mxu0 0.0
    %844 = vmatpush1.msra.mxu0 0.0
    %845 = vmatprep.subr.mxu0 0.0
    %846 = vmatpush1.msra.mxu0 0.0
    %847 = vmatprep.subr.mxu0 0.0
    %848 = vmatpush1.msra.mxu0 0.0
    %849 = vmatprep.subr.mxu0 0.0
    %850 = vmatpush1.msra.mxu0 %v79
    %851 = vmatprep.subr.mxu0 0.0
    %852 = vmatpush1.msra.mxu0 %v78
    %853 = vmatprep.subr.mxu0 0.0
    %854 = vmatpush1.msra.mxu0 %v77
    %855 = vmatprep.subr.mxu0 0.0
    %856 = vmatpush1.msra.mxu0 %v76
    %857 = vmatprep.subr.mxu0 0.0
    %858 = vmatpush2.msra.mxu0 0.0
    %859 = vmatprep.subr.mxu0 0.0
    %860 = vmatpush2.msra.mxu0 0.0
    %861 = vmatprep.subr.mxu0 0.0
    %862 = vmatpush2.msra.mxu0 0.0
    %863 = vmatprep.subr.mxu0 0.0
    %864 = vmatpush2.msra.mxu0 0.0
    %865 = vmatprep.subr.mxu0 0.0
    %866 = vmatpush2.msra.mxu0 0.0
    %867 = vmatprep.subr.mxu0 0.0
    %868 = vmatpush2.msra.mxu0 0.0
    %869 = vmatprep.subr.mxu0 0.0
    %870 = vmatpush2.msra.mxu0 0.0
    %871 = vmatprep.subr.mxu0 0.0
    %872 = vmatpush2.msra.mxu0 0.0
    %873 = vmatprep.subr.mxu0 0.0
    %874 = vmatpush2.msra.mxu0 0.0
    %875 = vmatprep.subr.mxu0 0.0
    %876 = vmatpush2.msra.mxu0 0.0
    %877 = vmatprep.subr.mxu0 0.0
    %878 = vmatpush2.msra.mxu0 0.0
    %879 = vmatprep.subr.mxu0 0.0
    %880 = vmatpush2.msra.mxu0 0.0
    %881 = vmatprep.subr.mxu0 0.0
    %882 = vmatpush2.msra.mxu0 0.0
    %883 = vmatprep.subr.mxu0 0.0
    %884 = vmatpush2.msra.mxu0 0.0
    %885 = vmatprep.subr.mxu0 0.0
    %886 = vmatpush2.msra.mxu0 0.0
    %887 = vmatprep.subr.mxu0 0.0
    %888 = vmatpush2.msra.mxu0 0.0
    %889 = vmatprep.mubr.f32.mxu0 0.0
    %890 = vmatmul.mubr.f32.gmra.mxu0 %v823
    %v891 = vpop.f32.mrf.mxu0
    %v892 = vadd.f32 0.0, %v891
    %v893 = vpop.f32.mrf.mxu0
    %894 = vdwg.mxu0
    %v895 = vadd.f32 %v819, %v892
    %v896 = vtanh.pop %v895
    %897 = vmatprep.subr.mxu0 0.0
    %898 = vmatpush1.msra.mxu0 0.0
    %899 = vmatprep.subr.mxu0 0.0
    %900 = vmatpush1.msra.mxu0 0.0
    %901 = vmatprep.subr.mxu0 0.0
    %902 = vmatpush1.msra.mxu0 0.0
    %903 = vmatprep.subr.mxu0 0.0
    %904 = vmatpush1.msra.mxu0 0.0
    %905 = vmatprep.subr.mxu0 0.0
    %906 = vmatpush1.msra.mxu0 0.0
    %907 = vmatprep.subr.mxu0 0.0
    %908 = vmatpush1.msra.mxu0 0.0
    %909 = vmatprep.subr.mxu0 0.0
    %910 = vmatpush1.msra.mxu0 0.0
    %911 = vmatprep.subr.mxu0 0.0
    %912 = vmatpush1.msra.mxu0 0.0
    %913 = vmatprep.subr.mxu0 0.0
    %914 = vmatpush1.msra.mxu0 0.0
    %915 = vmatprep.subr.mxu0 0.0
    %916 = vmatpush1.msra.mxu0 0.0
    %917 = vmatprep.subr.mxu0 0.0
    %918 = vmatpush1.msra.mxu0 0.0
    %919 = vmatprep.subr.mxu0 0.0
    %920 = vmatpush1.msra.mxu0 0.0
    %921 = vmatprep.subr.mxu0 0.0
    %922 = vmatpush1.msra.mxu0 %v75
    %923 = vmatprep.subr.mxu0 0.0
    %924 = vmatpush1.msra.mxu0 %v74
    %925 = vmatprep.subr.mxu0 0.0
    %926 = vmatpush1.msra.mxu0 %v73
    %927 = vmatprep.subr.mxu0 0.0
    %928 = vmatpush1.msra.mxu0 %v72
    %929 = vmatprep.subr.mxu0 0.0
    %930 = vmatpush2.msra.mxu0 0.0
    %931 = vmatprep.subr.mxu0 0.0
    %932 = vmatpush2.msra.mxu0 0.0
    %933 = vmatprep.subr.mxu0 0.0
    %934 = vmatpush2.msra.mxu0 0.0
    %935 = vmatprep.subr.mxu0 0.0
    %936 = vmatpush2.msra.mxu0 0.0
    %937 = vmatprep.subr.mxu0 0.0
    %938 = vmatpush2.msra.mxu0 0.0
    %939 = vmatprep.subr.mxu0 0.0
    %940 = vmatpush2.msra.mxu0 0.0
    %941 = vmatprep.subr.mxu0 0.0
    %942 = vmatpush2.msra.mxu0 0.0
    %943 = vmatprep.subr.mxu0 0.0
    %944 = vmatpush2.msra.mxu0 0.0
    %945 = vmatprep.subr.mxu0 0.0
    %946 = vmatpush2.msra.mxu0 0.0
    %947 = vmatprep.subr.mxu0 0.0
    %948 = vmatpush2.msra.mxu0 0.0
    %949 = vmatprep.subr.mxu0 0.0
    %950 = vmatpush2.msra.mxu0 0.0
    %951 = vmatprep.subr.mxu0 0.0
    %952 = vmatpush2.msra.mxu0 0.0
    %953 = vmatprep.subr.mxu0 0.0
    %954 = vmatpush2.msra.mxu0 0.0
    %955 = vmatprep.subr.mxu0 0.0
    %956 = vmatpush2.msra.mxu0 0.0
    %957 = vmatprep.subr.mxu0 0.0
    %958 = vmatpush2.msra.mxu0 0.0
    %959 = vmatprep.subr.mxu0 0.0
    %960 = vmatpush2.msra.mxu0 0.0
    %961 = vmatprep.mubr.f32.mxu0 0.0
    %962 = vmatmul.mubr.f32.gmra.mxu0 %v750
    %v963 = vpop.f32.mrf.mxu0
    %v964 = vadd.f32 0.0, %v963
    %v965 = vpop.f32.mrf.mxu0
    %966 = vdwg.mxu0
    %v967 = vadd.f32 %v207, %v964
    %v968 = vtanh.pop %v967
    %v970 = vsel %vm230, %v968, 0
    %972 = vmatprep.subr.mxu0 0.0
    %973 = vmatpush1.msra.mxu0 0.0
    %974 = vmatprep.subr.mxu0 0.0
    %975 = vmatpush1.msra.mxu0 0.0
    %976 = vmatprep.subr.mxu0 0.0
    %977 = vmatpush1.msra.mxu0 0.0
    %978 = vmatprep.subr.mxu0 0.0
    %979 = vmatpush1.msra.mxu0 0.0
    %980 = vmatprep.subr.mxu0 0.0
    %981 = vmatpush1.msra.mxu0 0.0
    %982 = vmatprep.subr.mxu0 0.0
    %983 = vmatpush1.msra.mxu0 0.0
    %984 = vmatprep.subr.mxu0 0.0
    %985 = vmatpush1.msra.mxu0 0.0
    %986 = vmatprep.subr.mxu0 0.0
    %987 = vmatpush1.msra.mxu0 0.0
    %988 = vmatprep.subr.mxu0 0.0
    %989 = vmatpush1.msra.mxu0 0.0
    %990 = vmatprep.subr.mxu0 0.0
    %991 = vmatpush1.msra.mxu0 0.0
    %992 = vmatprep.subr.mxu0 0.0
    %993 = vmatpush1.msra.mxu0 0.0
    %994 = vmatprep.subr.mxu0 0.0
    %995 = vmatpush1.msra.mxu0 0.0
    %996 = vmatprep.subr.mxu0 0.0
    %997 = vmatpush1.msra.mxu0 %v71
    %998 = vmatprep.subr.mxu0 0.0
    %999 = vmatpush1.msra.mxu0 %v70
    %1000 = vmatprep.subr.mxu0 0.0
    %1001 = vmatpush1.msra.mxu0 %v69
    %1002 = vmatprep.subr.mxu0 0.0
    %1003 = vmatpush1.msra.mxu0 %v68
    %1004 = vmatprep.subr.mxu0 0.0
    %1005 = vmatpush2.msra.mxu0 0.0
    %1006 = vmatprep.subr.mxu0 0.0
    %1007 = vmatpush2.msra.mxu0 0.0
    %1008 = vmatprep.subr.mxu0 0.0
    %1009 = vmatpush2.msra.mxu0 0.0
    %1010 = vmatprep.subr.mxu0 0.0
    %1011 = vmatpush2.msra.mxu0 0.0
    %1012 = vmatprep.subr.mxu0 0.0
    %1013 = vmatpush2.msra.mxu0 0.0
    %1014 = vmatprep.subr.mxu0 0.0
    %1015 = vmatpush2.msra.mxu0 0.0
    %1016 = vmatprep.subr.mxu0 0.0
    %1017 = vmatpush2.msra.mxu0 0.0
    %1018 = vmatprep.subr.mxu0 0.0
    %1019 = vmatpush2.msra.mxu0 0.0
    %1020 = vmatprep.subr.mxu0 0.0
    %1021 = vmatpush2.msra.mxu0 0.0
    %1022 = vmatprep.subr.mxu0 0.0
    %1023 = vmatpush2.msra.mxu0 0.0
    %1024 = vmatprep.subr.mxu0 0.0
    %1025 = vmatpush2.msra.mxu0 0.0
    %1026 = vmatprep.subr.mxu0 0.0
    %1027 = vmatpush2.msra.mxu0 0.0
    %1028 = vmatprep.subr.mxu0 0.0
    %1029 = vmatpush2.msra.mxu0 0.0
    %1030 = vmatprep.subr.mxu0 0.0
    %1031 = vmatpush2.msra.mxu0 0.0
    %1032 = vmatprep.subr.mxu0 0.0
    %1033 = vmatpush2.msra.mxu0 0.0
    %1034 = vmatprep.subr.mxu0 0.0
    %1035 = vmatpush2.msra.mxu0 0.0
    %1036 = vmatprep.mubr.f32.mxu0 0.0
    %1037 = vmatmul.mubr.f32.gmra.mxu0 %v970
    %v1038 = vpop.f32.mrf.mxu0
    %v1039 = vadd.f32 %v310, %v1038
    %v1040 = vpop.f32.mrf.mxu0
    %1041 = vdwg.mxu0
    %v1043 = vsel %vm230, %v896, 0
    %1045 = vmatprep.subr.mxu0 0.0
    %1046 = vmatpush1.msra.mxu0 0.0
    %1047 = vmatprep.subr.mxu0 0.0
    %1048 = vmatpush1.msra.mxu0 0.0
    %1049 = vmatprep.subr.mxu0 0.0
    %1050 = vmatpush1.msra.mxu0 0.0
    %1051 = vmatprep.subr.mxu0 0.0
    %1052 = vmatpush1.msra.mxu0 0.0
    %1053 = vmatprep.subr.mxu0 0.0
    %1054 = vmatpush1.msra.mxu0 0.0
    %1055 = vmatprep.subr.mxu0 0.0
    %1056 = vmatpush1.msra.mxu0 0.0
    %1057 = vmatprep.subr.mxu0 0.0
    %1058 = vmatpush1.msra.mxu0 0.0
    %1059 = vmatprep.subr.mxu0 0.0
    %1060 = vmatpush1.msra.mxu0 0.0
    %1061 = vmatprep.subr.mxu0 0.0
    %1062 = vmatpush1.msra.mxu0 0.0
    %1063 = vmatprep.subr.mxu0 0.0
    %1064 = vmatpush1.msra.mxu0 0.0
    %1065 = vmatprep.subr.mxu0 0.0
    %1066 = vmatpush1.msra.mxu0 0.0
    %1067 = vmatprep.subr.mxu0 0.0
    %1068 = vmatpush1.msra.mxu0 0.0
    %1069 = vmatprep.subr.mxu0 0.0
    %1070 = vmatpush1.msra.mxu0 %v79
    %1071 = vmatprep.subr.mxu0 0.0
    %1072 = vmatpush1.msra.mxu0 %v78
    %1073 = vmatprep.subr.mxu0 0.0
    %1074 = vmatpush1.msra.mxu0 %v77
    %1075 = vmatprep.subr.mxu0 0.0
    %1076 = vmatpush1.msra.mxu0 %v76
    %1077 = vmatprep.subr.mxu0 0.0
    %1078 = vmatpush2.msra.mxu0 0.0
    %1079 = vmatprep.subr.mxu0 0.0
    %1080 = vmatpush2.msra.mxu0 0.0
    %1081 = vmatprep.subr.mxu0 0.0
    %1082 = vmatpush2.msra.mxu0 0.0
    %1083 = vmatprep.subr.mxu0 0.0
    %1084 = vmatpush2.msra.mxu0 0.0
    %1085 = vmatprep.subr.mxu0 0.0
    %1086 = vmatpush2.msra.mxu0 0.0
    %1087 = vmatprep.subr.mxu0 0.0
    %1088 = vmatpush2.msra.mxu0 0.0
    %1089 = vmatprep.subr.mxu0 0.0
    %1090 = vmatpush2.msra.mxu0 0.0
    %1091 = vmatprep.subr.mxu0 0.0
    %1092 = vmatpush2.msra.mxu0 0.0
    %1093 = vmatprep.subr.mxu0 0.0
    %1094 = vmatpush2.msra.mxu0 0.0
    %1095 = vmatprep.subr.mxu0 0.0
    %1096 = vmatpush2.msra.mxu0 0.0
    %1097 = vmatprep.subr.mxu0 0.0
    %1098 = vmatpush2.msra.mxu0 0.0
    %1099 = vmatprep.subr.mxu0 0.0
    %1100 = vmatpush2.msra.mxu0 0.0
    %1101 = vmatprep.subr.mxu0 0.0
    %1102 = vmatpush2.msra.mxu0 0.0
    %1103 = vmatprep.subr.mxu0 0.0
    %1104 = vmatpush2.msra.mxu0 0.0
    %1105 = vmatprep.subr.mxu0 0.0
    %1106 = vmatpush2.msra.mxu0 0.0
    %1107 = vmatprep.subr.mxu0 0.0
    %1108 = vmatpush2.msra.mxu0 0.0
    %1109 = vmatprep.mubr.f32.mxu0 0.0
    %1110 = vmatmul.mubr.f32.gmra.mxu0 %v1043
    %v1111 = vpop.f32.mrf.mxu0
    %v1112 = vadd.f32 0.0, %v1111
    %v1113 = vpop.f32.mrf.mxu0
    %1114 = vdwg.mxu0
    %v1115 = vadd.f32 %v1039, %v1112
    %v1116 = vtanh.pop %v1115
    %1117 = vmatprep.subr.mxu0 0.0
    %1118 = vmatpush1.msra.mxu0 0.0
    %1119 = vmatprep.subr.mxu0 0.0
    %1120 = vmatpush1.msra.mxu0 0.0
    %1121 = vmatprep.subr.mxu0 0.0
    %1122 = vmatpush1.msra.mxu0 0.0
    %1123 = vmatprep.subr.mxu0 0.0
    %1124 = vmatpush1.msra.mxu0 0.0
    %1125 = vmatprep.subr.mxu0 0.0
    %1126 = vmatpush1.msra.mxu0 0.0
    %1127 = vmatprep.subr.mxu0 0.0
    %1128 = vmatpush1.msra.mxu0 0.0
    %1129 = vmatprep.subr.mxu0 0.0
    %1130 = vmatpush1.msra.mxu0 0.0
    %1131 = vmatprep.subr.mxu0 0.0
    %1132 = vmatpush1.msra.mxu0 0.0
    %1133 = vmatprep.subr.mxu0 0.0
    %1134 = vmatpush1.msra.mxu0 0.0
    %1135 = vmatprep.subr.mxu0 0.0
    %1136 = vmatpush1.msra.mxu0 0.0
    %1137 = vmatprep.subr.mxu0 0.0
    %1138 = vmatpush1.msra.mxu0 0.0
    %1139 = vmatprep.subr.mxu0 0.0
    %1140 = vmatpush1.msra.mxu0 0.0
    %1141 = vmatprep.subr.mxu0 0.0
    %1142 = vmatpush1.msra.mxu0 %v75
    %1143 = vmatprep.subr.mxu0 0.0
    %1144 = vmatpush1.msra.mxu0 %v74
    %1145 = vmatprep.subr.mxu0 0.0
    %1146 = vmatpush1.msra.mxu0 %v73
    %1147 = vmatprep.subr.mxu0 0.0
    %1148 = vmatpush1.msra.mxu0 %v72
    %1149 = vmatprep.subr.mxu0 0.0
    %1150 = vmatpush2.msra.mxu0 0.0
    %1151 = vmatprep.subr.mxu0 0.0
    %1152 = vmatpush2.msra.mxu0 0.0
    %1153 = vmatprep.subr.mxu0 0.0
    %1154 = vmatpush2.msra.mxu0 0.0
    %1155 = vmatprep.subr.mxu0 0.0
    %1156 = vmatpush2.msra.mxu0 0.0
    %1157 = vmatprep.subr.mxu0 0.0
    %1158 = vmatpush2.msra.mxu0 0.0
    %1159 = vmatprep.subr.mxu0 0.0
    %1160 = vmatpush2.msra.mxu0 0.0
    %1161 = vmatprep.subr.mxu0 0.0
    %1162 = vmatpush2.msra.mxu0 0.0
    %1163 = vmatprep.subr.mxu0 0.0
    %1164 = vmatpush2.msra.mxu0 0.0
    %1165 = vmatprep.subr.mxu0 0.0
    %1166 = vmatpush2.msra.mxu0 0.0
    %1167 = vmatprep.subr.mxu0 0.0
    %1168 = vmatpush2.msra.mxu0 0.0
    %1169 = vmatprep.subr.mxu0 0.0
    %1170 = vmatpush2.msra.mxu0 0.0
    %1171 = vmatprep.subr.mxu0 0.0
    %1172 = vmatpush2.msra.mxu0 0.0
    %1173 = vmatprep.subr.mxu0 0.0
    %1174 = vmatpush2.msra.mxu0 0.0
    %1175 = vmatprep.subr.mxu0 0.0
    %1176 = vmatpush2.msra.mxu0 0.0
    %1177 = vmatprep.subr.mxu0 0.0
    %1178 = vmatpush2.msra.mxu0 0.0
    %1179 = vmatprep.subr.mxu0 0.0
    %1180 = vmatpush2.msra.mxu0 0.0
    %1181 = vmatprep.mubr.f32.mxu0 0.0
    %1182 = vmatmul.mubr.f32.gmra.mxu0 %v970
    %v1183 = vpop.f32.mrf.mxu0
    %v1184 = vadd.f32 0.0, %v1183
    %v1185 = vpop.f32.mrf.mxu0
    %1186 = vdwg.mxu0
    %v1187 = vadd.f32 %v212, %v1184
    %v1188 = vtanh.pop %v1187
    %v1190 = vsel %vm230, %v1188, 0
    %1192 = vmatprep.subr.mxu0 0.0
    %1193 = vmatpush1.msra.mxu0 0.0
    %1194 = vmatprep.subr.mxu0 0.0
    %1195 = vmatpush1.msra.mxu0 0.0
    %1196 = vmatprep.subr.mxu0 0.0
    %1197 = vmatpush1.msra.mxu0 0.0
    %1198 = vmatprep.subr.mxu0 0.0
    %1199 = vmatpush1.msra.mxu0 0.0
    %1200 = vmatprep.subr.mxu0 0.0
    %1201 = vmatpush1.msra.mxu0 0.0
    %1202 = vmatprep.subr.mxu0 0.0
    %1203 = vmatpush1.msra.mxu0 0.0
    %1204 = vmatprep.subr.mxu0 0.0
    %1205 = vmatpush1.msra.mxu0 0.0
    %1206 = vmatprep.subr.mxu0 0.0
    %1207 = vmatpush1.msra.mxu0 0.0
    %1208 = vmatprep.subr.mxu0 0.0
    %1209 = vmatpush1.msra.mxu0 0.0
    %1210 = vmatprep.subr.mxu0 0.0
    %1211 = vmatpush1.msra.mxu0 0.0
    %1212 = vmatprep.subr.mxu0 0.0
    %1213 = vmatpush1.msra.mxu0 0.0
    %1214 = vmatprep.subr.mxu0 0.0
    %1215 = vmatpush1.msra.mxu0 0.0
    %1216 = vmatprep.subr.mxu0 0.0
    %1217 = vmatpush1.msra.mxu0 %v71
    %1218 = vmatprep.subr.mxu0 0.0
    %1219 = vmatpush1.msra.mxu0 %v70
    %1220 = vmatprep.subr.mxu0 0.0
    %1221 = vmatpush1.msra.mxu0 %v69
    %1222 = vmatprep.subr.mxu0 0.0
    %1223 = vmatpush1.msra.mxu0 %v68
    %1224 = vmatprep.subr.mxu0 0.0
    %1225 = vmatpush2.msra.mxu0 0.0
    %1226 = vmatprep.subr.mxu0 0.0
    %1227 = vmatpush2.msra.mxu0 0.0
    %1228 = vmatprep.subr.mxu0 0.0
    %1229 = vmatpush2.msra.mxu0 0.0
    %1230 = vmatprep.subr.mxu0 0.0
    %1231 = vmatpush2.msra.mxu0 0.0
    %1232 = vmatprep.subr.mxu0 0.0
    %1233 = vmatpush2.msra.mxu0 0.0
    %1234 = vmatprep.subr.mxu0 0.0
    %1235 = vmatpush2.msra.mxu0 0.0
    %1236 = vmatprep.subr.mxu0 0.0
    %1237 = vmatpush2.msra.mxu0 0.0
    %1238 = vmatprep.subr.mxu0 0.0
    %1239 = vmatpush2.msra.mxu0 0.0
    %1240 = vmatprep.subr.mxu0 0.0
    %1241 = vmatpush2.msra.mxu0 0.0
    %1242 = vmatprep.subr.mxu0 0.0
    %1243 = vmatpush2.msra.mxu0 0.0
    %1244 = vmatprep.subr.mxu0 0.0
    %1245 = vmatpush2.msra.mxu0 0.0
    %1246 = vmatprep.subr.mxu0 0.0
    %1247 = vmatpush2.msra.mxu0 0.0
    %1248 = vmatprep.subr.mxu0 0.0
    %1249 = vmatpush2.msra.mxu0 0.0
    %1250 = vmatprep.subr.mxu0 0.0
    %1251 = vmatpush2.msra.mxu0 0.0
    %1252 = vmatprep.subr.mxu0 0.0
    %1253 = vmatpush2.msra.mxu0 0.0
    %1254 = vmatprep.subr.mxu0 0.0
    %1255 = vmatpush2.msra.mxu0 0.0
    %1256 = vmatprep.mubr.f32.mxu0 0.0
    %1257 = vmatmul.mubr.f32.gmra.mxu0 %v1190
    %v1258 = vpop.f32.mrf.mxu0
    %v1259 = vadd.f32 %v310, %v1258
    %v1260 = vpop.f32.mrf.mxu0
    %1261 = vdwg.mxu0
    %v1263 = vsel %vm230, %v1116, 0
    %1265 = vmatprep.subr.mxu0 0.0
    %1266 = vmatpush1.msra.mxu0 0.0
    %1267 = vmatprep.subr.mxu0 0.0
    %1268 = vmatpush1.msra.mxu0 0.0
    %1269 = vmatprep.subr.mxu0 0.0
    %1270 = vmatpush1.msra.mxu0 0.0
    %1271 = vmatprep.subr.mxu0 0.0
    %1272 = vmatpush1.msra.mxu0 0.0
    %1273 = vmatprep.subr.mxu0 0.0
    %1274 = vmatpush1.msra.mxu0 0.0
    %1275 = vmatprep.subr.mxu0 0.0
    %1276 = vmatpush1.msra.mxu0 0.0
    %1277 = vmatprep.subr.mxu0 0.0
    %1278 = vmatpush1.msra.mxu0 0.0
    %1279 = vmatprep.subr.mxu0 0.0
    %1280 = vmatpush1.msra.mxu0 0.0
    %1281 = vmatprep.subr.mxu0 0.0
    %1282 = vmatpush1.msra.mxu0 0.0
    %1283 = vmatprep.subr.mxu0 0.0
    %1284 = vmatpush1.msra.mxu0 0.0
    %1285 = vmatprep.subr.mxu0 0.0
    %1286 = vmatpush1.msra.mxu0 0.0
    %1287 = vmatprep.subr.mxu0 0.0
    %1288 = vmatpush1.msra.mxu0 0.0
    %1289 = vmatprep.subr.mxu0 0.0
    %1290 = vmatpush1.msra.mxu0 %v79
    %1291 = vmatprep.subr.mxu0 0.0
    %1292 = vmatpush1.msra.mxu0 %v78
    %1293 = vmatprep.subr.mxu0 0.0
    %1294 = vmatpush1.msra.mxu0 %v77
    %1295 = vmatprep.subr.mxu0 0.0
    %1296 = vmatpush1.msra.mxu0 %v76
    %1297 = vmatprep.subr.mxu0 0.0
    %1298 = vmatpush2.msra.mxu0 0.0
    %1299 = vmatprep.subr.mxu0 0.0
    %1300 = vmatpush2.msra.mxu0 0.0
    %1301 = vmatprep.subr.mxu0 0.0
    %1302 = vmatpush2.msra.mxu0 0.0
    %1303 = vmatprep.subr.mxu0 0.0
    %1304 = vmatpush2.msra.mxu0 0.0
    %1305 = vmatprep.subr.mxu0 0.0
    %1306 = vmatpush2.msra.mxu0 0.0
    %1307 = vmatprep.subr.mxu0 0.0
    %1308 = vmatpush2.msra.mxu0 0.0
    %1309 = vmatprep.subr.mxu0 0.0
    %1310 = vmatpush2.msra.mxu0 0.0
    %1311 = vmatprep.subr.mxu0 0.0
    %1312 = vmatpush2.msra.mxu0 0.0
    %1313 = vmatprep.subr.mxu0 0.0
    %1314 = vmatpush2.msra.mxu0 0.0
    %1315 = vmatprep.subr.mxu0 0.0
    %1316 = vmatpush2.msra.mxu0 0.0
    %1317 = vmatprep.subr.mxu0 0.0
    %1318 = vmatpush2.msra.mxu0 0.0
    %1319 = vmatprep.subr.mxu0 0.0
    %1320 = vmatpush2.msra.mxu0 0.0
    %1321 = vmatprep.subr.mxu0 0.0
    %1322 = vmatpush2.msra.mxu0 0.0
    %1323 = vmatprep.subr.mxu0 0.0
    %1324 = vmatpush2.msra.mxu0 0.0
    %1325 = vmatprep.subr.mxu0 0.0
    %1326 = vmatpush2.msra.mxu0 0.0
    %1327 = vmatprep.subr.mxu0 0.0
    %1328 = vmatpush2.msra.mxu0 0.0
    %1329 = vmatprep.mubr.f32.mxu0 0.0
    %1330 = vmatmul.mubr.f32.gmra.mxu0 %v1263
    %v1331 = vpop.f32.mrf.mxu0
    %v1332 = vadd.f32 0.0, %v1331
    %v1333 = vpop.f32.mrf.mxu0
    %1334 = vdwg.mxu0
    %v1335 = vadd.f32 %v1259, %v1332
    %v1336 = vtanh.pop %v1335
    %1337 = vmatprep.subr.mxu0 0.0
    %1338 = vmatpush1.msra.mxu0 0.0
    %1339 = vmatprep.subr.mxu0 0.0
    %1340 = vmatpush1.msra.mxu0 0.0
    %1341 = vmatprep.subr.mxu0 0.0
    %1342 = vmatpush1.msra.mxu0 0.0
    %1343 = vmatprep.subr.mxu0 0.0
    %1344 = vmatpush1.msra.mxu0 0.0
    %1345 = vmatprep.subr.mxu0 0.0
    %1346 = vmatpush1.msra.mxu0 0.0
    %1347 = vmatprep.subr.mxu0 0.0
    %1348 = vmatpush1.msra.mxu0 0.0
    %1349 = vmatprep.subr.mxu0 0.0
    %1350 = vmatpush1.msra.mxu0 0.0
    %1351 = vmatprep.subr.mxu0 0.0
    %1352 = vmatpush1.msra.mxu0 0.0
    %1353 = vmatprep.subr.mxu0 0.0
    %1354 = vmatpush1.msra.mxu0 0.0
    %1355 = vmatprep.subr.mxu0 0.0
    %1356 = vmatpush1.msra.mxu0 0.0
    %1357 = vmatprep.subr.mxu0 0.0
    %1358 = vmatpush1.msra.mxu0 0.0
    %1359 = vmatprep.subr.mxu0 0.0
    %1360 = vmatpush1.msra.mxu0 0.0
    %1361 = vmatprep.subr.mxu0 0.0
    %1362 = vmatpush1.msra.mxu0 %v75
    %1363 = vmatprep.subr.mxu0 0.0
    %1364 = vmatpush1.msra.mxu0 %v74
    %1365 = vmatprep.subr.mxu0 0.0
    %1366 = vmatpush1.msra.mxu0 %v73
    %1367 = vmatprep.subr.mxu0 0.0
    %1368 = vmatpush1.msra.mxu0 %v72
    %1369 = vmatprep.subr.mxu0 0.0
    %1370 = vmatpush2.msra.mxu0 0.0
    %1371 = vmatprep.subr.mxu0 0.0
    %1372 = vmatpush2.msra.mxu0 0.0
    %1373 = vmatprep.subr.mxu0 0.0
    %1374 = vmatpush2.msra.mxu0 0.0
    %1375 = vmatprep.subr.mxu0 0.0
    %1376 = vmatpush2.msra.mxu0 0.0
    %1377 = vmatprep.subr.mxu0 0.0
    %1378 = vmatpush2.msra.mxu0 0.0
    %1379 = vmatprep.subr.mxu0 0.0
    %1380 = vmatpush2.msra.mxu0 0.0
    %1381 = vmatprep.subr.mxu0 0.0
    %1382 = vmatpush2.msra.mxu0 0.0
    %1383 = vmatprep.subr.mxu0 0.0
    %1384 = vmatpush2.msra.mxu0 0.0
    %1385 = vmatprep.subr.mxu0 0.0
    %1386 = vmatpush2.msra.mxu0 0.0
    %1387 = vmatprep.subr.mxu0 0.0
    %1388 = vmatpush2.msra.mxu0 0.0
    %1389 = vmatprep.subr.mxu0 0.0
    %1390 = vmatpush2.msra.mxu0 0.0
    %1391 = vmatprep.subr.mxu0 0.0
    %1392 = vmatpush2.msra.mxu0 0.0
    %1393 = vmatprep.subr.mxu0 0.0
    %1394 = vmatpush2.msra.mxu0 0.0
    %1395 = vmatprep.subr.mxu0 0.0
    %1396 = vmatpush2.msra.mxu0 0.0
    %1397 = vmatprep.subr.mxu0 0.0
    %1398 = vmatpush2.msra.mxu0 0.0
    %1399 = vmatprep.subr.mxu0 0.0
    %1400 = vmatpush2.msra.mxu0 0.0
    %1401 = vmatprep.mubr.f32.mxu0 0.0
    %1402 = vmatmul.mubr.f32.gmra.mxu0 %v1190
    %v1403 = vpop.f32.mrf.mxu0
    %v1404 = vadd.f32 0.0, %v1403
    %v1405 = vpop.f32.mrf.mxu0
    %1406 = vdwg.mxu0
    %v1407 = vadd.f32 %v217, %v1404
    %v1408 = vtanh.pop %v1407
    %v1410 = vsel %vm230, %v1408, 0
    %1412 = vmatprep.subr.mxu0 0.0
    %1413 = vmatpush1.msra.mxu0 0.0
    %1414 = vmatprep.subr.mxu0 0.0
    %1415 = vmatpush1.msra.mxu0 0.0
    %1416 = vmatprep.subr.mxu0 0.0
    %1417 = vmatpush1.msra.mxu0 0.0
    %1418 = vmatprep.subr.mxu0 0.0
    %1419 = vmatpush1.msra.mxu0 0.0
    %1420 = vmatprep.subr.mxu0 0.0
    %1421 = vmatpush1.msra.mxu0 0.0
    %1422 = vmatprep.subr.mxu0 0.0
    %1423 = vmatpush1.msra.mxu0 0.0
    %1424 = vmatprep.subr.mxu0 0.0
    %1425 = vmatpush1.msra.mxu0 0.0
    %1426 = vmatprep.subr.mxu0 0.0
    %1427 = vmatpush1.msra.mxu0 0.0
    %1428 = vmatprep.subr.mxu0 0.0
    %1429 = vmatpush1.msra.mxu0 0.0
    %1430 = vmatprep.subr.mxu0 0.0
    %1431 = vmatpush1.msra.mxu0 0.0
    %1432 = vmatprep.subr.mxu0 0.0
    %1433 = vmatpush1.msra.mxu0 0.0
    %1434 = vmatprep.subr.mxu0 0.0
    %1435 = vmatpush1.msra.mxu0 0.0
    %1436 = vmatprep.subr.mxu0 0.0
    %1437 = vmatpush1.msra.mxu0 %v71
    %1438 = vmatprep.subr.mxu0 0.0
    %1439 = vmatpush1.msra.mxu0 %v70
    %1440 = vmatprep.subr.mxu0 0.0
    %1441 = vmatpush1.msra.mxu0 %v69
    %1442 = vmatprep.subr.mxu0 0.0
    %1443 = vmatpush1.msra.mxu0 %v68
    %1444 = vmatprep.subr.mxu0 0.0
    %1445 = vmatpush2.msra.mxu0 0.0
    %1446 = vmatprep.subr.mxu0 0.0
    %1447 = vmatpush2.msra.mxu0 0.0
    %1448 = vmatprep.subr.mxu0 0.0
    %1449 = vmatpush2.msra.mxu0 0.0
    %1450 = vmatprep.subr.mxu0 0.0
    %1451 = vmatpush2.msra.mxu0 0.0
    %1452 = vmatprep.subr.mxu0 0.0
    %1453 = vmatpush2.msra.mxu0 0.0
    %1454 = vmatprep.subr.mxu0 0.0
    %1455 = vmatpush2.msra.mxu0 0.0
    %1456 = vmatprep.subr.mxu0 0.0
    %1457 = vmatpush2.msra.mxu0 0.0
    %1458 = vmatprep.subr.mxu0 0.0
    %1459 = vmatpush2.msra.mxu0 0.0
    %1460 = vmatprep.subr.mxu0 0.0
    %1461 = vmatpush2.msra.mxu0 0.0
    %1462 = vmatprep.subr.mxu0 0.0
    %1463 = vmatpush2.msra.mxu0 0.0
    %1464 = vmatprep.subr.mxu0 0.0
    %1465 = vmatpush2.msra.mxu0 0.0
    %1466 = vmatprep.subr.mxu0 0.0
    %1467 = vmatpush2.msra.mxu0 0.0
    %1468 = vmatprep.subr.mxu0 0.0
    %1469 = vmatpush2.msra.mxu0 0.0
    %1470 = vmatprep.subr.mxu0 0.0
    %1471 = vmatpush2.msra.mxu0 0.0
    %1472 = vmatprep.subr.mxu0 0.0
    %1473 = vmatpush2.msra.mxu0 0.0
    %1474 = vmatprep.subr.mxu0 0.0
    %1475 = vmatpush2.msra.mxu0 0.0
    %1476 = vmatprep.mubr.f32.mxu0 0.0
    %1477 = vmatmul.mubr.f32.gmra.mxu0 %v1410
    %v1478 = vpop.f32.mrf.mxu0
    %v1479 = vadd.f32 %v310, %v1478
    %v1480 = vpop.f32.mrf.mxu0
    %1481 = vdwg.mxu0
    %v1483 = vsel %vm230, %v1336, 0
    %1485 = vmatprep.subr.mxu0 0.0
    %1486 = vmatpush1.msra.mxu0 0.0
    %1487 = vmatprep.subr.mxu0 0.0
    %1488 = vmatpush1.msra.mxu0 0.0
    %1489 = vmatprep.subr.mxu0 0.0
    %1490 = vmatpush1.msra.mxu0 0.0
    %1491 = vmatprep.subr.mxu0 0.0
    %1492 = vmatpush1.msra.mxu0 0.0
    %1493 = vmatprep.subr.mxu0 0.0
    %1494 = vmatpush1.msra.mxu0 0.0
    %1495 = vmatprep.subr.mxu0 0.0
    %1496 = vmatpush1.msra.mxu0 0.0
    %1497 = vmatprep.subr.mxu0 0.0
    %1498 = vmatpush1.msra.mxu0 0.0
    %1499 = vmatprep.subr.mxu0 0.0
    %1500 = vmatpush1.msra.mxu0 0.0
    %1501 = vmatprep.subr.mxu0 0.0
    %1502 = vmatpush1.msra.mxu0 0.0
    %1503 = vmatprep.subr.mxu0 0.0
    %1504 = vmatpush1.msra.mxu0 0.0
    %1505 = vmatprep.subr.mxu0 0.0
    %1506 = vmatpush1.msra.mxu0 0.0
    %1507 = vmatprep.subr.mxu0 0.0
    %1508 = vmatpush1.msra.mxu0 0.0
    %1509 = vmatprep.subr.mxu0 0.0
    %1510 = vmatpush1.msra.mxu0 %v79
    %1511 = vmatprep.subr.mxu0 0.0
    %1512 = vmatpush1.msra.mxu0 %v78
    %1513 = vmatprep.subr.mxu0 0.0
    %1514 = vmatpush1.msra.mxu0 %v77
    %1515 = vmatprep.subr.mxu0 0.0
    %1516 = vmatpush1.msra.mxu0 %v76
    %1517 = vmatprep.subr.mxu0 0.0
    %1518 = vmatpush2.msra.mxu0 0.0
    %1519 = vmatprep.subr.mxu0 0.0
    %1520 = vmatpush2.msra.mxu0 0.0
    %1521 = vmatprep.subr.mxu0 0.0
    %1522 = vmatpush2.msra.mxu0 0.0
    %1523 = vmatprep.subr.mxu0 0.0
    %1524 = vmatpush2.msra.mxu0 0.0
    %1525 = vmatprep.subr.mxu0 0.0
    %1526 = vmatpush2.msra.mxu0 0.0
    %1527 = vmatprep.subr.mxu0 0.0
    %1528 = vmatpush2.msra.mxu0 0.0
    %1529 = vmatprep.subr.mxu0 0.0
    %1530 = vmatpush2.msra.mxu0 0.0
    %1531 = vmatprep.subr.mxu0 0.0
    %1532 = vmatpush2.msra.mxu0 0.0
    %1533 = vmatprep.subr.mxu0 0.0
    %1534 = vmatpush2.msra.mxu0 0.0
    %1535 = vmatprep.subr.mxu0 0.0
    %1536 = vmatpush2.msra.mxu0 0.0
    %1537 = vmatprep.subr.mxu0 0.0
    %1538 = vmatpush2.msra.mxu0 0.0
    %1539 = vmatprep.subr.mxu0 0.0
    %1540 = vmatpush2.msra.mxu0 0.0
    %1541 = vmatprep.subr.mxu0 0.0
    %1542 = vmatpush2.msra.mxu0 0.0
    %1543 = vmatprep.subr.mxu0 0.0
    %1544 = vmatpush2.msra.mxu0 0.0
    %1545 = vmatprep.subr.mxu0 0.0
    %1546 = vmatpush2.msra.mxu0 0.0
    %1547 = vmatprep.subr.mxu0 0.0
    %1548 = vmatpush2.msra.mxu0 0.0
    %1549 = vmatprep.mubr.f32.mxu0 0.0
    %1550 = vmatmul.mubr.f32.gmra.mxu0 %v1483
    %v1551 = vpop.f32.mrf.mxu0
    %v1552 = vadd.f32 0.0, %v1551
    %v1553 = vpop.f32.mrf.mxu0
    %1554 = vdwg.mxu0
    %v1555 = vadd.f32 %v1479, %v1552
    %v1556 = vtanh.pop %v1555
    %1557 = vmatprep.subr.mxu0 0.0
    %1558 = vmatpush1.msra.mxu0 0.0
    %1559 = vmatprep.subr.mxu0 0.0
    %1560 = vmatpush1.msra.mxu0 0.0
    %1561 = vmatprep.subr.mxu0 0.0
    %1562 = vmatpush1.msra.mxu0 0.0
    %1563 = vmatprep.subr.mxu0 0.0
    %1564 = vmatpush1.msra.mxu0 0.0
    %1565 = vmatprep.subr.mxu0 0.0
    %1566 = vmatpush1.msra.mxu0 0.0
    %1567 = vmatprep.subr.mxu0 0.0
    %1568 = vmatpush1.msra.mxu0 0.0
    %1569 = vmatprep.subr.mxu0 0.0
    %1570 = vmatpush1.msra.mxu0 0.0
    %1571 = vmatprep.subr.mxu0 0.0
    %1572 = vmatpush1.msra.mxu0 0.0
    %1573 = vmatprep.subr.mxu0 0.0
    %1574 = vmatpush1.msra.mxu0 0.0
    %1575 = vmatprep.subr.mxu0 0.0
    %1576 = vmatpush1.msra.mxu0 0.0
    %1577 = vmatprep.subr.mxu0 0.0
    %1578 = vmatpush1.msra.mxu0 0.0
    %1579 = vmatprep.subr.mxu0 0.0
    %1580 = vmatpush1.msra.mxu0 0.0
    %1581 = vmatprep.subr.mxu0 0.0
    %1582 = vmatpush1.msra.mxu0 %v75
    %1583 = vmatprep.subr.mxu0 0.0
    %1584 = vmatpush1.msra.mxu0 %v74
    %1585 = vmatprep.subr.mxu0 0.0
    %1586 = vmatpush1.msra.mxu0 %v73
    %1587 = vmatprep.subr.mxu0 0.0
    %1588 = vmatpush1.msra.mxu0 %v72
    %1589 = vmatprep.subr.mxu0 0.0
    %1590 = vmatpush2.msra.mxu0 0.0
    %1591 = vmatprep.subr.mxu0 0.0
    %1592 = vmatpush2.msra.mxu0 0.0
    %1593 = vmatprep.subr.mxu0 0.0
    %1594 = vmatpush2.msra.mxu0 0.0
    %1595 = vmatprep.subr.mxu0 0.0
    %1596 = vmatpush2.msra.mxu0 0.0
    %1597 = vmatprep.subr.mxu0 0.0
    %1598 = vmatpush2.msra.mxu0 0.0
    %1599 = vmatprep.subr.mxu0 0.0
    %1600 = vmatpush2.msra.mxu0 0.0
    %1601 = vmatprep.subr.mxu0 0.0
    %1602 = vmatpush2.msra.mxu0 0.0
    %1603 = vmatprep.subr.mxu0 0.0
    %1604 = vmatpush2.msra.mxu0 0.0
    %1605 = vmatprep.subr.mxu0 0.0
    %1606 = vmatpush2.msra.mxu0 0.0
    %1607 = vmatprep.subr.mxu0 0.0
    %1608 = vmatpush2.msra.mxu0 0.0
    %1609 = vmatprep.subr.mxu0 0.0
    %1610 = vmatpush2.msra.mxu0 0.0
    %1611 = vmatprep.subr.mxu0 0.0
    %1612 = vmatpush2.msra.mxu0 0.0
    %1613 = vmatprep.subr.mxu0 0.0
    %1614 = vmatpush2.msra.mxu0 0.0
    %1615 = vmatprep.subr.mxu0 0.0
    %1616 = vmatpush2.msra.mxu0 0.0
    %1617 = vmatprep.subr.mxu0 0.0
    %1618 = vmatpush2.msra.mxu0 0.0
    %1619 = vmatprep.subr.mxu0 0.0
    %1620 = vmatpush2.msra.mxu0 0.0
    %1621 = vmatprep.mubr.f32.mxu0 0.0
    %1622 = vmatmul.mubr.f32.gmra.mxu0 %v1410
    %v1623 = vpop.f32.mrf.mxu0
    %v1624 = vadd.f32 0.0, %v1623
    %v1625 = vpop.f32.mrf.mxu0
    %1626 = vdwg.mxu0
    %v1627 = vadd.f32 %v222, %v1624
    %v1628 = vtanh.pop %v1627
    %v1630 = vsel %vm230, %v1628, 0
    %1632 = vmatprep.subr.mxu0 0.0
    %1633 = vmatpush1.msra.mxu0 0.0
    %1634 = vmatprep.subr.mxu0 0.0
    %1635 = vmatpush1.msra.mxu0 0.0
    %1636 = vmatprep.subr.mxu0 0.0
    %1637 = vmatpush1.msra.mxu0 0.0
    %1638 = vmatprep.subr.mxu0 0.0
    %1639 = vmatpush1.msra.mxu0 0.0
    %1640 = vmatprep.subr.mxu0 0.0
    %1641 = vmatpush1.msra.mxu0 0.0
    %1642 = vmatprep.subr.mxu0 0.0
    %1643 = vmatpush1.msra.mxu0 0.0
    %1644 = vmatprep.subr.mxu0 0.0
    %1645 = vmatpush1.msra.mxu0 0.0
    %1646 = vmatprep.subr.mxu0 0.0
    %1647 = vmatpush1.msra.mxu0 0.0
    %1648 = vmatprep.subr.mxu0 0.0
    %1649 = vmatpush1.msra.mxu0 0.0
    %1650 = vmatprep.subr.mxu0 0.0
    %1651 = vmatpush1.msra.mxu0 0.0
    %1652 = vmatprep.subr.mxu0 0.0
    %1653 = vmatpush1.msra.mxu0 0.0
    %1654 = vmatprep.subr.mxu0 0.0
    %1655 = vmatpush1.msra.mxu0 0.0
    %1656 = vmatprep.subr.mxu0 0.0
    %1657 = vmatpush1.msra.mxu0 %v71
    %1658 = vmatprep.subr.mxu0 0.0
    %1659 = vmatpush1.msra.mxu0 %v70
    %1660 = vmatprep.subr.mxu0 0.0
    %1661 = vmatpush1.msra.mxu0 %v69
    %1662 = vmatprep.subr.mxu0 0.0
    %1663 = vmatpush1.msra.mxu0 %v68
    %1664 = vmatprep.subr.mxu0 0.0
    %1665 = vmatpush2.msra.mxu0 0.0
    %1666 = vmatprep.subr.mxu0 0.0
    %1667 = vmatpush2.msra.mxu0 0.0
    %1668 = vmatprep.subr.mxu0 0.0
    %1669 = vmatpush2.msra.mxu0 0.0
    %1670 = vmatprep.subr.mxu0 0.0
    %1671 = vmatpush2.msra.mxu0 0.0
    %1672 = vmatprep.subr.mxu0 0.0
    %1673 = vmatpush2.msra.mxu0 0.0
    %1674 = vmatprep.subr.mxu0 0.0
    %1675 = vmatpush2.msra.mxu0 0.0
    %1676 = vmatprep.subr.mxu0 0.0
    %1677 = vmatpush2.msra.mxu0 0.0
    %1678 = vmatprep.subr.mxu0 0.0
    %1679 = vmatpush2.msra.mxu0 0.0
    %1680 = vmatprep.subr.mxu0 0.0
    %1681 = vmatpush2.msra.mxu0 0.0
    %1682 = vmatprep.subr.mxu0 0.0
    %1683 = vmatpush2.msra.mxu0 0.0
    %1684 = vmatprep.subr.mxu0 0.0
    %1685 = vmatpush2.msra.mxu0 0.0
    %1686 = vmatprep.subr.mxu0 0.0
    %1687 = vmatpush2.msra.mxu0 0.0
    %1688 = vmatprep.subr.mxu0 0.0
    %1689 = vmatpush2.msra.mxu0 0.0
    %1690 = vmatprep.subr.mxu0 0.0
    %1691 = vmatpush2.msra.mxu0 0.0
    %1692 = vmatprep.subr.mxu0 0.0
    %1693 = vmatpush2.msra.mxu0 0.0
    %1694 = vmatprep.subr.mxu0 0.0
    %1695 = vmatpush2.msra.mxu0 0.0
    %1696 = vmatprep.mubr.f32.mxu0 0.0
    %1697 = vmatmul.mubr.f32.gmra.mxu0 %v1630
    %v1698 = vpop.f32.mrf.mxu0
    %v1699 = vadd.f32 %v310, %v1698
    %v1700 = vpop.f32.mrf.mxu0
    %1701 = vdwg.mxu0
    %v1703 = vsel %vm230, %v1556, 0
    %1705 = vmatprep.subr.mxu0 0.0
    %1706 = vmatpush1.msra.mxu0 0.0
    %1707 = vmatprep.subr.mxu0 0.0
    %1708 = vmatpush1.msra.mxu0 0.0
    %1709 = vmatprep.subr.mxu0 0.0
    %1710 = vmatpush1.msra.mxu0 0.0
    %1711 = vmatprep.subr.mxu0 0.0
    %1712 = vmatpush1.msra.mxu0 0.0
    %1713 = vmatprep.subr.mxu0 0.0
    %1714 = vmatpush1.msra.mxu0 0.0
    %1715 = vmatprep.subr.mxu0 0.0
    %1716 = vmatpush1.msra.mxu0 0.0
    %1717 = vmatprep.subr.mxu0 0.0
    %1718 = vmatpush1.msra.mxu0 0.0
    %1719 = vmatprep.subr.mxu0 0.0
    %1720 = vmatpush1.msra.mxu0 0.0
    %1721 = vmatprep.subr.mxu0 0.0
    %1722 = vmatpush1.msra.mxu0 0.0
    %1723 = vmatprep.subr.mxu0 0.0
    %1724 = vmatpush1.msra.mxu0 0.0
    %1725 = vmatprep.subr.mxu0 0.0
    %1726 = vmatpush1.msra.mxu0 0.0
    %1727 = vmatprep.subr.mxu0 0.0
    %1728 = vmatpush1.msra.mxu0 0.0
    %1729 = vmatprep.subr.mxu0 0.0
    %1730 = vmatpush1.msra.mxu0 %v79
    %1731 = vmatprep.subr.mxu0 0.0
    %1732 = vmatpush1.msra.mxu0 %v78
    %1733 = vmatprep.subr.mxu0 0.0
    %1734 = vmatpush1.msra.mxu0 %v77
    %1735 = vmatprep.subr.mxu0 0.0
    %1736 = vmatpush1.msra.mxu0 %v76
    %1737 = vmatprep.subr.mxu0 0.0
    %1738 = vmatpush2.msra.mxu0 0.0
    %1739 = vmatprep.subr.mxu0 0.0
    %1740 = vmatpush2.msra.mxu0 0.0
    %1741 = vmatprep.subr.mxu0 0.0
    %1742 = vmatpush2.msra.mxu0 0.0
    %1743 = vmatprep.subr.mxu0 0.0
    %1744 = vmatpush2.msra.mxu0 0.0
    %1745 = vmatprep.subr.mxu0 0.0
    %1746 = vmatpush2.msra.mxu0 0.0
    %1747 = vmatprep.subr.mxu0 0.0
    %1748 = vmatpush2.msra.mxu0 0.0
    %1749 = vmatprep.subr.mxu0 0.0
    %1750 = vmatpush2.msra.mxu0 0.0
    %1751 = vmatprep.subr.mxu0 0.0
    %1752 = vmatpush2.msra.mxu0 0.0
    %1753 = vmatprep.subr.mxu0 0.0
    %1754 = vmatpush2.msra.mxu0 0.0
    %1755 = vmatprep.subr.mxu0 0.0
    %1756 = vmatpush2.msra.mxu0 0.0
    %1757 = vmatprep.subr.mxu0 0.0
    %1758 = vmatpush2.msra.mxu0 0.0
    %1759 = vmatprep.subr.mxu0 0.0
    %1760 = vmatpush2.msra.mxu0 0.0
    %1761 = vmatprep.subr.mxu0 0.0
    %1762 = vmatpush2.msra.mxu0 0.0
    %1763 = vmatprep.subr.mxu0 0.0
    %1764 = vmatpush2.msra.mxu0 0.0
    %1765 = vmatprep.subr.mxu0 0.0
    %1766 = vmatpush2.msra.mxu0 0.0
    %1767 = vmatprep.subr.mxu0 0.0
    %1768 = vmatpush2.msra.mxu0 0.0
    %1769 = vmatprep.mubr.f32.mxu0 0.0
    %1770 = vmatmul.mubr.f32.gmra.mxu0 %v1703
    %v1771 = vpop.f32.mrf.mxu0
    %v1772 = vadd.f32 0.0, %v1771
    %v1773 = vpop.f32.mrf.mxu0
    %1774 = vdwg.mxu0
    %v1775 = vadd.f32 %v1699, %v1772
    %v1776 = vtanh.pop %v1775
    %1777 = vmatprep.subr.mxu0 0.0
    %1778 = vmatpush1.msra.mxu0 0.0
    %1779 = vmatprep.subr.mxu0 0.0
    %1780 = vmatpush1.msra.mxu0 0.0
    %1781 = vmatprep.subr.mxu0 0.0
    %1782 = vmatpush1.msra.mxu0 0.0
    %1783 = vmatprep.subr.mxu0 0.0
    %1784 = vmatpush1.msra.mxu0 0.0
    %1785 = vmatprep.subr.mxu0 0.0
    %1786 = vmatpush1.msra.mxu0 0.0
    %1787 = vmatprep.subr.mxu0 0.0
    %1788 = vmatpush1.msra.mxu0 0.0
    %1789 = vmatprep.subr.mxu0 0.0
    %1790 = vmatpush1.msra.mxu0 0.0
    %1791 = vmatprep.subr.mxu0 0.0
    %1792 = vmatpush1.msra.mxu0 0.0
    %1793 = vmatprep.subr.mxu0 0.0
    %1794 = vmatpush1.msra.mxu0 0.0
    %1795 = vmatprep.subr.mxu0 0.0
    %1796 = vmatpush1.msra.mxu0 0.0
    %1797 = vmatprep.subr.mxu0 0.0
    %1798 = vmatpush1.msra.mxu0 0.0
    %1799 = vmatprep.subr.mxu0 0.0
    %1800 = vmatpush1.msra.mxu0 0.0
    %1801 = vmatprep.subr.mxu0 0.0
    %1802 = vmatpush1.msra.mxu0 %v75
    %1803 = vmatprep.subr.mxu0 0.0
    %1804 = vmatpush1.msra.mxu0 %v74
    %1805 = vmatprep.subr.mxu0 0.0
    %1806 = vmatpush1.msra.mxu0 %v73
    %1807 = vmatprep.subr.mxu0 0.0
    %1808 = vmatpush1.msra.mxu0 %v72
    %1809 = vmatprep.subr.mxu0 0.0
    %1810 = vmatpush2.msra.mxu0 0.0
    %1811 = vmatprep.subr.mxu0 0.0
    %1812 = vmatpush2.msra.mxu0 0.0
    %1813 = vmatprep.subr.mxu0 0.0
    %1814 = vmatpush2.msra.mxu0 0.0
    %1815 = vmatprep.subr.mxu0 0.0
    %1816 = vmatpush2.msra.mxu0 0.0
    %1817 = vmatprep.subr.mxu0 0.0
    %1818 = vmatpush2.msra.mxu0 0.0
    %1819 = vmatprep.subr.mxu0 0.0
    %1820 = vmatpush2.msra.mxu0 0.0
    %1821 = vmatprep.subr.mxu0 0.0
    %1822 = vmatpush2.msra.mxu0 0.0
    %1823 = vmatprep.subr.mxu0 0.0
    %1824 = vmatpush2.msra.mxu0 0.0
    %1825 = vmatprep.subr.mxu0 0.0
    %1826 = vmatpush2.msra.mxu0 0.0
    %1827 = vmatprep.subr.mxu0 0.0
    %1828 = vmatpush2.msra.mxu0 0.0
    %1829 = vmatprep.subr.mxu0 0.0
    %1830 = vmatpush2.msra.mxu0 0.0
    %1831 = vmatprep.subr.mxu0 0.0
    %1832 = vmatpush2.msra.mxu0 0.0
    %1833 = vmatprep.subr.mxu0 0.0
    %1834 = vmatpush2.msra.mxu0 0.0
    %1835 = vmatprep.subr.mxu0 0.0
    %1836 = vmatpush2.msra.mxu0 0.0
    %1837 = vmatprep.subr.mxu0 0.0
    %1838 = vmatpush2.msra.mxu0 0.0
    %1839 = vmatprep.subr.mxu0 0.0
    %1840 = vmatpush2.msra.mxu0 0.0
    %1841 = vmatprep.mubr.f32.mxu0 0.0
    %1842 = vmatmul.mubr.f32.gmra.mxu0 %v1630
    %v1843 = vpop.f32.mrf.mxu0
    %v1844 = vadd.f32 0.0, %v1843
    %v1845 = vpop.f32.mrf.mxu0
    %1846 = vdwg.mxu0
    %v1847 = vadd.f32 %v227, %v1844
    %v1848 = vtanh.pop %v1847
    %v1850 = vsel %vm230, %v1848, 0
    %1852 = vmatprep.subr.mxu0 0.0
    %1853 = vmatpush1.msra.mxu0 0.0
    %1854 = vmatprep.subr.mxu0 0.0
    %1855 = vmatpush1.msra.mxu0 0.0
    %1856 = vmatprep.subr.mxu0 0.0
    %1857 = vmatpush1.msra.mxu0 0.0
    %1858 = vmatprep.subr.mxu0 0.0
    %1859 = vmatpush1.msra.mxu0 0.0
    %1860 = vmatprep.subr.mxu0 0.0
    %1861 = vmatpush1.msra.mxu0 0.0
    %1862 = vmatprep.subr.mxu0 0.0
    %1863 = vmatpush1.msra.mxu0 0.0
    %1864 = vmatprep.subr.mxu0 0.0
    %1865 = vmatpush1.msra.mxu0 0.0
    %1866 = vmatprep.subr.mxu0 0.0
    %1867 = vmatpush1.msra.mxu0 0.0
    %1868 = vmatprep.subr.mxu0 0.0
    %1869 = vmatpush1.msra.mxu0 0.0
    %1870 = vmatprep.subr.mxu0 0.0
    %1871 = vmatpush1.msra.mxu0 0.0
    %1872 = vmatprep.subr.mxu0 0.0
    %1873 = vmatpush1.msra.mxu0 0.0
    %1874 = vmatprep.subr.mxu0 0.0
    %1875 = vmatpush1.msra.mxu0 0.0
    %1876 = vmatprep.subr.mxu0 0.0
    %1877 = vmatpush1.msra.mxu0 %v71
    %1878 = vmatprep.subr.mxu0 0.0
    %1879 = vmatpush1.msra.mxu0 %v70
    %1880 = vmatprep.subr.mxu0 0.0
    %1881 = vmatpush1.msra.mxu0 %v69
    %1882 = vmatprep.subr.mxu0 0.0
    %1883 = vmatpush1.msra.mxu0 %v68
    %1884 = vmatprep.subr.mxu0 0.0
    %1885 = vmatpush2.msra.mxu0 0.0
    %1886 = vmatprep.subr.mxu0 0.0
    %1887 = vmatpush2.msra.mxu0 0.0
    %1888 = vmatprep.subr.mxu0 0.0
    %1889 = vmatpush2.msra.mxu0 0.0
    %1890 = vmatprep.subr.mxu0 0.0
    %1891 = vmatpush2.msra.mxu0 0.0
    %1892 = vmatprep.subr.mxu0 0.0
    %1893 = vmatpush2.msra.mxu0 0.0
    %1894 = vmatprep.subr.mxu0 0.0
    %1895 = vmatpush2.msra.mxu0 0.0
    %1896 = vmatprep.subr.mxu0 0.0
    %1897 = vmatpush2.msra.mxu0 0.0
    %1898 = vmatprep.subr.mxu0 0.0
    %1899 = vmatpush2.msra.mxu0 0.0
    %1900 = vmatprep.subr.mxu0 0.0
    %1901 = vmatpush2.msra.mxu0 0.0
    %1902 = vmatprep.subr.mxu0 0.0
    %1903 = vmatpush2.msra.mxu0 0.0
    %1904 = vmatprep.subr.mxu0 0.0
    %1905 = vmatpush2.msra.mxu0 0.0
    %1906 = vmatprep.subr.mxu0 0.0
    %1907 = vmatpush2.msra.mxu0 0.0
    %1908 = vmatprep.subr.mxu0 0.0
    %1909 = vmatpush2.msra.mxu0 0.0
    %1910 = vmatprep.subr.mxu0 0.0
    %1911 = vmatpush2.msra.mxu0 0.0
    %1912 = vmatprep.subr.mxu0 0.0
    %1913 = vmatpush2.msra.mxu0 0.0
    %1914 = vmatprep.subr.mxu0 0.0
    %1915 = vmatpush2.msra.mxu0 0.0
    %1916 = vmatprep.mubr.f32.mxu0 0.0
    %1917 = vmatmul.mubr.f32.gmra.mxu0 %v1850
    %v1918 = vpop.f32.mrf.mxu0
    %v1919 = vadd.f32 %v310, %v1918
    %v1920 = vpop.f32.mrf.mxu0
    %1921 = vdwg.mxu0
    %v1923 = vsel %vm230, %v1776, 0
    %1925 = vmatprep.subr.mxu0 0.0
    %1926 = vmatpush1.msra.mxu0 0.0
    %1927 = vmatprep.subr.mxu0 0.0
    %1928 = vmatpush1.msra.mxu0 0.0
    %1929 = vmatprep.subr.mxu0 0.0
    %1930 = vmatpush1.msra.mxu0 0.0
    %1931 = vmatprep.subr.mxu0 0.0
    %1932 = vmatpush1.msra.mxu0 0.0
    %1933 = vmatprep.subr.mxu0 0.0
    %1934 = vmatpush1.msra.mxu0 0.0
    %1935 = vmatprep.subr.mxu0 0.0
    %1936 = vmatpush1.msra.mxu0 0.0
    %1937 = vmatprep.subr.mxu0 0.0
    %1938 = vmatpush1.msra.mxu0 0.0
    %1939 = vmatprep.subr.mxu0 0.0
    %1940 = vmatpush1.msra.mxu0 0.0
    %1941 = vmatprep.subr.mxu0 0.0
    %1942 = vmatpush1.msra.mxu0 0.0
    %1943 = vmatprep.subr.mxu0 0.0
    %1944 = vmatpush1.msra.mxu0 0.0
    %1945 = vmatprep.subr.mxu0 0.0
    %1946 = vmatpush1.msra.mxu0 0.0
    %1947 = vmatprep.subr.mxu0 0.0
    %1948 = vmatpush1.msra.mxu0 0.0
    %1949 = vmatprep.subr.mxu0 0.0
    %1950 = vmatpush1.msra.mxu0 %v79
    %1951 = vmatprep.subr.mxu0 0.0
    %1952 = vmatpush1.msra.mxu0 %v78
    %1953 = vmatprep.subr.mxu0 0.0
    %1954 = vmatpush1.msra.mxu0 %v77
    %1955 = vmatprep.subr.mxu0 0.0
    %1956 = vmatpush1.msra.mxu0 %v76
    %1957 = vmatprep.subr.mxu0 0.0
    %1958 = vmatpush2.msra.mxu0 0.0
    %1959 = vmatprep.subr.mxu0 0.0
    %1960 = vmatpush2.msra.mxu0 0.0
    %1961 = vmatprep.subr.mxu0 0.0
    %1962 = vmatpush2.msra.mxu0 0.0
    %1963 = vmatprep.subr.mxu0 0.0
    %1964 = vmatpush2.msra.mxu0 0.0
    %1965 = vmatprep.subr.mxu0 0.0
    %1966 = vmatpush2.msra.mxu0 0.0
    %1967 = vmatprep.subr.mxu0 0.0
    %1968 = vmatpush2.msra.mxu0 0.0
    %1969 = vmatprep.subr.mxu0 0.0
    %1970 = vmatpush2.msra.mxu0 0.0
    %1971 = vmatprep.subr.mxu0 0.0
    %1972 = vmatpush2.msra.mxu0 0.0
    %1973 = vmatprep.subr.mxu0 0.0
    %1974 = vmatpush2.msra.mxu0 0.0
    %1975 = vmatprep.subr.mxu0 0.0
    %1976 = vmatpush2.msra.mxu0 0.0
    %1977 = vmatprep.subr.mxu0 0.0
    %1978 = vmatpush2.msra.mxu0 0.0
    %1979 = vmatprep.subr.mxu0 0.0
    %1980 = vmatpush2.msra.mxu0 0.0
    %1981 = vmatprep.subr.mxu0 0.0
    %1982 = vmatpush2.msra.mxu0 0.0
    %1983 = vmatprep.subr.mxu0 0.0
    %1984 = vmatpush2.msra.mxu0 0.0
    %1985 = vmatprep.subr.mxu0 0.0
    %1986 = vmatpush2.msra.mxu0 0.0
    %1987 = vmatprep.subr.mxu0 0.0
    %1988 = vmatpush2.msra.mxu0 0.0
    %1989 = vmatprep.mubr.f32.mxu0 0.0
    %1990 = vmatmul.mubr.f32.gmra.mxu0 %v1923
    %v1991 = vpop.f32.mrf.mxu0
    %v1992 = vadd.f32 0.0, %v1991
    %v1993 = vpop.f32.mrf.mxu0
    %1994 = vdwg.mxu0
    %v1995 = vadd.f32 %v1919, %v1992
    %v1996 = vtanh.pop %v1995
    %v1997 = vld [vmem:[#allocation5] sm:$0xff]
    %v1998 = vld [vmem:[#allocation5 + $0x8] sm:$0xff]
    %v1999 = vld [vmem:[#allocation5 + $0x10] sm:$0xff]
    %v2000 = vld [vmem:[#allocation5 + $0x18] sm:$0xff]
    %v2001 = vld [vmem:[%s1] sm:$0xff]
    %v2002 = vld [vmem:[%s9] sm:$0xf]
    %v2004 = vsel %vm96, %v2001, 0
    %v2007 = vsel %vm121, %v2002, 0
    %2009 = vmatprep.subr.mxu0 0.0
    %2010 = vmatpush1.msra.mxu0 0.0
    %2011 = vmatprep.subr.mxu0 0.0
    %2012 = vmatpush1.msra.mxu0 0.0
    %2013 = vmatprep.subr.mxu0 0.0
    %2014 = vmatpush1.msra.mxu0 0.0
    %2015 = vmatprep.subr.mxu0 0.0
    %2016 = vmatpush1.msra.mxu0 0.0
    %2017 = vmatprep.subr.mxu0 0.0
    %2018 = vmatpush1.msra.mxu0 0.0
    %2019 = vmatprep.subr.mxu0 0.0
    %2020 = vmatpush1.msra.mxu0 0.0
    %2021 = vmatprep.subr.mxu0 0.0
    %2022 = vmatpush1.msra.mxu0 0.0
    %2023 = vmatprep.subr.mxu0 0.0
    %2024 = vmatpush1.msra.mxu0 0.0
    %2025 = vmatprep.subr.mxu0 0.0
    %2026 = vmatpush1.msra.mxu0 0.0
    %2027 = vmatprep.subr.mxu0 0.0
    %2028 = vmatpush1.msra.mxu0 0.0
    %2029 = vmatprep.subr.mxu0 0.0
    %2030 = vmatpush1.msra.mxu0 0.0
    %2031 = vmatprep.subr.mxu0 0.0
    %2032 = vmatpush1.msra.mxu0 0.0
    %2033 = vmatprep.subr.mxu0 0.0
    %2034 = vmatpush1.msra.mxu0 0.0
    %2035 = vmatprep.subr.mxu0 0.0
    %2036 = vmatpush1.msra.mxu0 0.0
    %2037 = vmatprep.subr.mxu0 0.0
    %2038 = vmatpush1.msra.mxu0 0.0
    %2039 = vmatprep.subr.mxu0 0.0
    %2040 = vmatpush1.msra.mxu0 %v2007
    %2041 = vmatprep.subr.mxu0 0.0
    %2042 = vmatpush2.msra.mxu0 0.0
    %2043 = vmatprep.subr.mxu0 0.0
    %2044 = vmatpush2.msra.mxu0 0.0
    %2045 = vmatprep.subr.mxu0 0.0
    %2046 = vmatpush2.msra.mxu0 0.0
    %2047 = vmatprep.subr.mxu0 0.0
    %2048 = vmatpush2.msra.mxu0 0.0
    %2049 = vmatprep.subr.mxu0 0.0
    %2050 = vmatpush2.msra.mxu0 0.0
    %2051 = vmatprep.subr.mxu0 0.0
    %2052 = vmatpush2.msra.mxu0 0.0
    %2053 = vmatprep.subr.mxu0 0.0
    %2054 = vmatpush2.msra.mxu0 0.0
    %2055 = vmatprep.subr.mxu0 0.0
    %2056 = vmatpush2.msra.mxu0 0.0
    %2057 = vmatprep.subr.mxu0 0.0
    %2058 = vmatpush2.msra.mxu0 0.0
    %2059 = vmatprep.subr.mxu0 0.0
    %2060 = vmatpush2.msra.mxu0 0.0
    %2061 = vmatprep.subr.mxu0 0.0
    %2062 = vmatpush2.msra.mxu0 0.0
    %2063 = vmatprep.subr.mxu0 0.0
    %2064 = vmatpush2.msra.mxu0 0.0
    %2065 = vmatprep.subr.mxu0 0.0
    %2066 = vmatpush2.msra.mxu0 0.0
    %2067 = vmatprep.subr.mxu0 0.0
    %2068 = vmatpush2.msra.mxu0 0.0
    %2069 = vmatprep.subr.mxu0 0.0
    %2070 = vmatpush2.msra.mxu0 0.0
    %2071 = vmatprep.subr.mxu0 0.0
    %2072 = vmatpush2.msra.mxu0 0.0
    %2073 = vmatprep.mubr.f32.mxu0 0.0
    %2074 = vmatmul.mubr.f32.gmra.mxu0 %v2004
    %v2075 = vpop.f32.mrf.mxu0
    %v2076 = vadd.f32 0.0, %v2075
    %v2077 = vpop.f32.mrf.mxu0
    %2078 = vdwg.mxu0
    %v2080 = vsel %vm230, %v1996, 0
    %2082 = vmatprep.subr.mxu0 0.0
    %2083 = vmatpush1.msra.mxu0 0.0
    %2084 = vmatprep.subr.mxu0 0.0
    %2085 = vmatpush1.msra.mxu0 0.0
    %2086 = vmatprep.subr.mxu0 0.0
    %2087 = vmatpush1.msra.mxu0 0.0
    %2088 = vmatprep.subr.mxu0 0.0
    %2089 = vmatpush1.msra.mxu0 0.0
    %2090 = vmatprep.subr.mxu0 0.0
    %2091 = vmatpush1.msra.mxu0 0.0
    %2092 = vmatprep.subr.mxu0 0.0
    %2093 = vmatpush1.msra.mxu0 0.0
    %2094 = vmatprep.subr.mxu0 0.0
    %2095 = vmatpush1.msra.mxu0 0.0
    %2096 = vmatprep.subr.mxu0 0.0
    %2097 = vmatpush1.msra.mxu0 0.0
    %2098 = vmatprep.subr.mxu0 0.0
    %2099 = vmatpush1.msra.mxu0 0.0
    %2100 = vmatprep.subr.mxu0 0.0
    %2101 = vmatpush1.msra.mxu0 0.0
    %2102 = vmatprep.subr.mxu0 0.0
    %2103 = vmatpush1.msra.mxu0 0.0
    %2104 = vmatprep.subr.mxu0 0.0
    %2105 = vmatpush1.msra.mxu0 0.0
    %2106 = vmatprep.subr.mxu0 0.0
    %2107 = vmatpush1.msra.mxu0 %v2000
    %2108 = vmatprep.subr.mxu0 0.0
    %2109 = vmatpush1.msra.mxu0 %v1999
    %2110 = vmatprep.subr.mxu0 0.0
    %2111 = vmatpush1.msra.mxu0 %v1998
    %2112 = vmatprep.subr.mxu0 0.0
    %2113 = vmatpush1.msra.mxu0 %v1997
    %2114 = vmatprep.subr.mxu0 0.0
    %2115 = vmatpush2.msra.mxu0 0.0
    %2116 = vmatprep.subr.mxu0 0.0
    %2117 = vmatpush2.msra.mxu0 0.0
    %2118 = vmatprep.subr.mxu0 0.0
    %2119 = vmatpush2.msra.mxu0 0.0
    %2120 = vmatprep.subr.mxu0 0.0
    %2121 = vmatpush2.msra.mxu0 0.0
    %2122 = vmatprep.subr.mxu0 0.0
    %2123 = vmatpush2.msra.mxu0 0.0
    %2124 = vmatprep.subr.mxu0 0.0
    %2125 = vmatpush2.msra.mxu0 0.0
    %2126 = vmatprep.subr.mxu0 0.0
    %2127 = vmatpush2.msra.mxu0 0.0
    %2128 = vmatprep.subr.mxu0 0.0
    %2129 = vmatpush2.msra.mxu0 0.0
    %2130 = vmatprep.subr.mxu0 0.0
    %2131 = vmatpush2.msra.mxu0 0.0
    %2132 = vmatprep.subr.mxu0 0.0
    %2133 = vmatpush2.msra.mxu0 0.0
    %2134 = vmatprep.subr.mxu0 0.0
    %2135 = vmatpush2.msra.mxu0 0.0
    %2136 = vmatprep.subr.mxu0 0.0
    %2137 = vmatpush2.msra.mxu0 0.0
    %2138 = vmatprep.subr.mxu0 0.0
    %2139 = vmatpush2.msra.mxu0 0.0
    %2140 = vmatprep.subr.mxu0 0.0
    %2141 = vmatpush2.msra.mxu0 0.0
    %2142 = vmatprep.subr.mxu0 0.0
    %2143 = vmatpush2.msra.mxu0 0.0
    %2144 = vmatprep.subr.mxu0 0.0
    %2145 = vmatpush2.msra.mxu0 0.0
    %2146 = vmatprep.mubr.f32.mxu0 0.0
    %2147 = vmatmul.mubr.f32.gmra.mxu0 %v2080
    %v2148 = vpop.f32.mrf.mxu0
    %v2149 = vadd.f32 %v2076, %v2148
    %v2150 = vpop.f32.mrf.mxu0
    %2151 = vdwg.mxu0
    %v2152 = vld [vmem:[%s10] sm:$0x1]
    %v2154 = vlaneseq
    %v2155 = vshrl.u32 %v2154, 7
    %v2156 = vsub.s32 0, %v2155
    %v2157 = vrot.slane %v2152, %v2156
    %v2159 = vadd.f32 %v2149, %v2157
    %v2160 = vxor.u32 %v2159, 2147483648
    %v2161 = vmul.f32 %v2160, 1.442695
    %v2162 = vpow.pop %v2161
    %v2163 = vadd.f32 %v2162, 1.0
    %v2164 = vrcp.pop %v2163
    %v2165 = vmul.f32 1.0, %v2164
    %2166 = vst [vmem:[#allocation7] sm:$0xff] %v2165
    // Predicated region
    $region54: #{tpu_custom_call.1} parent=1 // pred_check
      _
    $region55: #{tpu_custom_call.1} parent=1 // pred_check_branch
      %2168 = sbr.rel (0) target = $region57
    $region56: #{tpu_custom_call.1} parent=1 // pred_region
      %s2170 = ssub.s32 128, 128
      %2171 = vsyncadd [#allocation4], %s2170
      %s2173 = sshll.u32 [#allocation7], 4
      %s2174 = int_to_ptr.vmem [resolvable:$true] %s2173
      %2176 = dma.vmem_to_hbm [thread:$0]  %s2174, 128, %s11, [#allocation4]
    $region57: #{tpu_custom_call.1} parent=1 // pred_fallthru
      _
    // Predicated region
    $region58: #{tpu_custom_call.1} parent=1 // pred_check
      _
    $region59: #{tpu_custom_call.1} parent=1 // pred_check_branch
      %2178 = sbr.rel (0) target = $region61
    $region60: #{tpu_custom_call.1} parent=1 // pred_region
      %2179 = dma.done [#allocation4], 128
    $region61: #{tpu_custom_call.1} parent=1 // pred_fallthru
      _
    %2180 = vsyncpa [#allocation3], 1
    %2181 = vsyncpa [#allocation6], 1
    %2182 = vsyncpa [#allocation4], 1

</llo_original>
